<compile_context>
chip_gen: v6e
topology: v6e:2x2x1
jax: 0.10.0
libtpu: 0.0.40
codegen_flags: <defaults>
</compile_context>

<pallas_src>
import math

import jax
import jax.numpy as jnp
from jax.experimental import pallas as pl
from jax.experimental.pallas import tpu as pltpu


def _round_up8(n):
    return max(8, ((n + 7) // 8) * 8)


# ----------------------------------------------------------------------------
# Fused Pallas kernel: one grid step == one graph segment
# ----------------------------------------------------------------------------
def _make_fused_kernel(num_heads, head_dim, hdiv):
    def kernel(lens_ref, src_ref, dst_ref,
               wq_ref, bq_ref, wkv_ref, bkv_ref, wm_ref, bm_ref,
               w1h_ref, w1m_ref, b1_ref, w2_ref, b2_ref, o_ref):
        g = pl.program_id(0)
        n_src = lens_ref[g, 0]                          # valid src rows this segment

        src = src_ref[0].astype(jnp.float32)            # [Ns_pad, h_dim]
        dst = dst_ref[0].astype(jnp.float32)            # [Nd_pad, h_dim]
        ns_pad = src.shape[0]

        # Q / K / V projections (1x1 convs == per-node linears).
        # K and V are one stacked matmul; 1/sqrt(head_dim) pre-folded into wq/bq.
        q = jnp.dot(dst, wq_ref[...], preferred_element_type=jnp.float32) + bq_ref[...]
        kv = jnp.dot(src, wkv_ref[...], preferred_element_type=jnp.float32) + bkv_ref[...]
        k = kv[:, :hdiv]
        v = kv[:, hdiv:]

        # Additive mask for padded key columns: [1, Ns_pad], broadcast over
        # query rows AND reused across all heads (computed once).
        col = jax.lax.broadcasted_iota(jnp.int32, (1, ns_pad), 1)
        key_bias = jnp.where(col < n_src, 0.0, -1e30).astype(jnp.float32)

        # Per-head attention, with the merge (wm) projection fused per head:
        #   msg = sum_h (attn_h @ v_h) @ wm_t[h*hd:(h+1)*hd, :]
        # Heads are contiguous channel slices (weights permuted offline);
        # num_heads is tiny so a static Python unroll is cheapest.
        msg = bm_ref[...]                                # [1, hdiv] -> broadcasts
        for hh in range(num_heads):
            sl = slice(hh * head_dim, (hh + 1) * head_dim)
            qh, kh, vh = q[:, sl], k[:, sl], v[:, sl]
            scores = jax.lax.dot_general(
                qh, kh, (((1,), (1,)), ((), ())),
                preferred_element_type=jnp.float32)      # [Nd_pad, Ns_pad]
            scores = scores + key_bias
            m = jnp.max(scores, axis=-1, keepdims=True)
            p = jnp.exp(scores - m)
            denom = jnp.sum(p, axis=-1, keepdims=True)
            attn = p * pl.reciprocal(denom, approx=True)  # EUP reciprocal
            oh = jnp.dot(attn, vh, preferred_element_type=jnp.float32)
            msg = msg + jnp.dot(oh, wm_ref[sl, :],
                                preferred_element_type=jnp.float32)

        # MLP + residual (BatchNorm eval-mode folded into the linears,
        # dropout == identity in eval).
        y = (jnp.dot(dst, w1h_ref[...], preferred_element_type=jnp.float32)
             + jnp.dot(msg, w1m_ref[...], preferred_element_type=jnp.float32)
             + b1_ref[...])
        y = jnp.maximum(y, 0.0)
        y = jnp.dot(y, w2_ref[...], preferred_element_type=jnp.float32) + b2_ref[...]
        o_ref[0] = (dst + y).astype(o_ref.dtype)

    return kernel


def fused_cross_attention(prep, src_pad, dst_pad, lens):
    """src_pad:[G,Ns_pad,h_dim], dst_pad:[G,Nd_pad,h_dim], lens:[G,2] int32."""
    G, Ns_pad, h_dim = src_pad.shape
    Nd_pad = dst_pad.shape[1]
    kernel = _make_fused_kernel(prep["num_heads"], prep["head_dim"], prep["hdiv"])

    weight_names = ("wq_t", "bq", "wkv_t", "bkv", "wm_t", "bm",
                    "w1h_t", "w1m_t", "b1f", "w2_t", "b2f")
    weights = [prep[n] for n in weight_names]

    in_specs = [
        pl.BlockSpec((1, Ns_pad, h_dim), lambda g, l: (g, 0, 0)),
        pl.BlockSpec((1, Nd_pad, h_dim), lambda g, l: (g, 0, 0)),
    ] + [pl.BlockSpec(w.shape, lambda g, l: (0, 0)) for w in weights]

    return pl.pallas_call(
        kernel,
        out_shape=jax.ShapeDtypeStruct((G, Nd_pad, h_dim), dst_pad.dtype),
        grid_spec=pltpu.PrefetchScalarGridSpec(
            num_scalar_prefetch=1,
            grid=(G,),
            in_specs=in_specs,
            out_specs=pl.BlockSpec((1, Nd_pad, h_dim), lambda g, l: (g, 0, 0)),
        ),
        compiler_params=pltpu.CompilerParams(
            dimension_semantics=("parallel",)),
    )(lens, src_pad, dst_pad, *weights)


# ----------------------------------------------------------------------------
# One-time parameter preparation (all transposes / permutations / BN folding
# hoisted out of the forward path)
# ----------------------------------------------------------------------------
def prepare_params(params, num_heads):
    h_dim = params["w1"].shape[0]
    hdiv = params["wq"].shape[0]
    head_dim = hdiv // num_heads
    eps = 1e-5

    # PyTorch's .view(1, head_dim, num_heads, -1) means channel c == d*H + h.
    # Permute so head channels are contiguous: new channel h*head_dim + d.
    perm = jnp.array([d * num_heads + h
                      for h in range(num_heads) for d in range(head_dim)],
                     dtype=jnp.int32)
    scale = 1.0 / math.sqrt(head_dim)

    wq_p = params["wq"][perm] * scale                 # fold 1/sqrt(d) into Q
    bq_p = params["bq"][perm] * scale
    wk_p, bk_p = params["wk"][perm], params["bk"][perm]
    wv_p, bv_p = params["wv"][perm], params["bv"][perm]
    wm_p = params["wm"][:, perm]                      # permute merge input cols

    # Fold eval-mode BatchNorm into the MLP linears.
    s1 = params["bn1_gamma"] / jnp.sqrt(params["bn1_var"] + eps)
    t1 = params["bn1_beta"] - params["bn1_mean"] * s1
    s2 = params["bn2_gamma"] / jnp.sqrt(params["bn2_var"] + eps)
    t2 = params["bn2_beta"] - params["bn2_mean"] * s2
    w1 = params["w1"]                                 # [h_dim, h_dim + hdiv]

    return dict(
        num_heads=num_heads, head_dim=head_dim, hdiv=hdiv, h_dim=h_dim,
        wq_t=jnp.transpose(wq_p),                                  # [h_dim, hdiv]
        bq=bq_p.reshape(1, hdiv),
        wkv_t=jnp.concatenate([jnp.transpose(wk_p),
                               jnp.transpose(wv_p)], axis=1),      # [h_dim, 2*hdiv]
        bkv=jnp.concatenate([bk_p, bv_p]).reshape(1, 2 * hdiv),
        wm_t=jnp.transpose(wm_p),                                  # [hdiv, hdiv]
        bm=params["bm"].reshape(1, hdiv),
        w1h_t=jnp.transpose(w1[:, :h_dim]) * s1[None, :],          # [h_dim, h_dim]
        w1m_t=jnp.transpose(w1[:, h_dim:]) * s1[None, :],          # [hdiv,  h_dim]
        b1f=(params["b1"] * s1 + t1).reshape(1, h_dim),
        w2_t=jnp.transpose(params["w2"]) * s2[None, :],            # [h_dim, h_dim]
        b2f=(params["b2"] * s2 + t2).reshape(1, h_dim),
    )


# ----------------------------------------------------------------------------
# Forward: pad ragged segments -> one fused pallas_call -> unpad
# ----------------------------------------------------------------------------
def cross_attention_forward(prep, src_h, dst_h, src_num_verts, dst_num_verts):
    Ns_pad = _round_up8(max(src_num_verts))
    Nd_pad = _round_up8(max(dst_num_verts))

    src_segs, dst_segs = [], []
    so = do = 0
    for ns, nd in zip(src_num_verts, dst_num_verts):
        s = src_h[so:so + ns]
        d = dst_h[do:do + nd]
        so += ns
        do += nd
        src_segs.append(jnp.pad(s, ((0, Ns_pad - ns), (0, 0))))
        dst_segs.append(jnp.pad(d, ((0, Nd_pad - nd), (0, 0))))
    src_pad = jnp.stack(src_segs)                        # [G, Ns_pad, h_dim]
    dst_pad = jnp.stack(dst_segs)                        # [G, Nd_pad, h_dim]
    lens = jnp.array([[ns, nd] for ns, nd in zip(src_num_verts, dst_num_verts)],
                     dtype=jnp.int32)                    # [G, 2] -> SMEM prefetch

    out_pad = fused_cross_attention(prep, src_pad, dst_pad, lens)

    outs = [out_pad[g, :nd] for g, nd in enumerate(dst_num_verts)]
    return jnp.concatenate(outs, axis=0)


# ----------------------------------------------------------------------------
# Pure-JAX reference (mirrors the PyTorch code, eval mode) for verification
# ----------------------------------------------------------------------------
def reference_forward(params, src_h, dst_h, src_nv, dst_nv, num_heads):
    hdiv = params["wq"].shape[0]
    head_dim = hdiv // num_heads
    eps = 1e-5

    def lin(x, w, b):
        return x @ w.T + b

    def bn(y, g, b_, m_, v_):
        return (y - m_) / jnp.sqrt(v_ + eps) * g + b_

    h = dst_h
    msgs = []
    so = do = 0
    for n_src, n_dst in zip(src_nv, dst_nv):
        s = src_h[so:so + n_src]
        d = dst_h[do:do + n_dst]
        so += n_src
        do += n_dst
        q = lin(d, params["wq"], params["bq"]).T.reshape(head_dim, num_heads, n_dst)
        k = lin(s, params["wk"], params["bk"]).T.reshape(head_dim, num_heads, n_src)
        v = lin(s, params["wv"], params["bv"]).T.reshape(head_dim, num_heads, n_src)
        scores = jnp.einsum("dhn,dhm->hnm", q, k) / math.sqrt(head_dim)
        attn = jax.nn.softmax(scores, axis=-1)
        o = jnp.einsum("hnm,dhm->dhn", attn, v).reshape(hdiv, n_dst).T
        msgs.append(lin(o, params["wm"], params["bm"]))
    h_msg = jnp.concatenate(msgs, axis=0)
    x = jnp.concatenate([h, h_msg], axis=-1)
    y = lin(x, params["w1"], params["b1"])
    y = bn(y, params["bn1_gamma"], params["bn1_beta"],
           params["bn1_mean"], params["bn1_var"])
    y = jnp.maximum(y, 0.0)
    y = lin(y, params["w2"], params["b2"])
    y = bn(y, params["bn2_gamma"], params["bn2_beta"],
           params["bn2_mean"], params["bn2_var"])
    return h + y


# ----------------------------------------------------------------------------
# Deterministic parameter init (shapes from CrossAttentionLayer.__init__)
# ----------------------------------------------------------------------------
def init_params(key, h_dim, hdiv):
    ks = jax.random.split(key, 12)

    def w(k, shape):
        return (0.1 * jax.random.normal(k, shape)).astype(jnp.float32)

    ones = jnp.ones((h_dim,), jnp.float32)
    zeros = jnp.zeros((h_dim,), jnp.float32)
    return dict(
        # proj[0] = query (applied to dst), proj[1] = key, proj[2] = value
        wq=w(ks[0], (hdiv, h_dim)), bq=w(ks[1], (hdiv,)),
        wk=w(ks[2], (hdiv, h_dim)), bk=w(ks[3], (hdiv,)),
        wv=w(ks[4], (hdiv, h_dim)), bv=w(ks[5], (hdiv,)),
        wm=w(ks[6], (hdiv, hdiv)), bm=w(ks[7], (hdiv,)),
        w1=w(ks[8], (h_dim, h_dim + hdiv)), b1=w(ks[9], (h_dim,)),
        w2=w(ks[10], (h_dim, h_dim)), b2=w(ks[11], (h_dim,)),
        bn1_gamma=ones, bn1_beta=zeros, bn1_mean=zeros, bn1_var=ones,
        bn2_gamma=ones, bn2_beta=zeros, bn2_mean=zeros, bn2_var=ones,
    )


# ----------------------------------------------------------------------------
if __name__ == "__main__":
    # config: h_dim=32, config.h_dim_div=2 -> self.h_dim_div=16, heads=2, head_dim=8
    h_dim = 32
    h_dim_divisor = 2
    hdiv = h_dim // h_dim_divisor
    num_heads = 2
    src_num_verts = (7, 9)
    dst_num_verts = (6, 10)

    key = jax.random.PRNGKey(0)
    kp, ksrc, kdst = jax.random.split(key, 3)
    params = init_params(kp, h_dim, hdiv)
    src_h = jax.random.normal(ksrc, (sum(src_num_verts), h_dim), jnp.float32)
    dst_h = jax.random.normal(kdst, (sum(dst_num_verts), h_dim), jnp.float32)

    # TODO(synk): Dropout / BatchNorm1d are implemented in eval (inference) mode;
    # training-mode batch statistics and dropout masks are not reproduced.
    prep = prepare_params(params, num_heads)            # one-time offline prep
    out = cross_attention_forward(prep, src_h, dst_h, src_num_verts, dst_num_verts)
    out = jax.block_until_ready(out)

    ref = reference_forward(params, src_h, dst_h, src_num_verts,
                            dst_num_verts, num_heads)
    assert out.shape == (sum(dst_num_verts), h_dim), out.shape
    # approx (EUP) reciprocal in the softmax introduces ~2^-12 relative error,
    # hence the slightly looser tolerance than exact-f32.
    assert jnp.allclose(out, ref, atol=1e-3, rtol=1e-3), \
        float(jnp.max(jnp.abs(out - ref)))
    print("KERNEL_OK")
</pallas_src>

<mosaic_0001>
module attributes {stable_mosaic.version = 11 : i64} {
  func.func @kernel(%arg0: i32, %arg1: memref<2x2xi32, #tpu.memory_space<smem>>, %arg2: memref<1x16x32xf32, #tpu.memory_space<vmem>>, %arg3: memref<1x16x32xf32, #tpu.memory_space<vmem>>, %arg4: memref<32x16xf32, #tpu.memory_space<vmem>>, %arg5: memref<1x16xf32, #tpu.memory_space<vmem>>, %arg6: memref<32x32xf32, #tpu.memory_space<vmem>>, %arg7: memref<1x32xf32, #tpu.memory_space<vmem>>, %arg8: memref<16x16xf32, #tpu.memory_space<vmem>>, %arg9: memref<1x16xf32, #tpu.memory_space<vmem>>, %arg10: memref<32x32xf32, #tpu.memory_space<vmem>>, %arg11: memref<16x32xf32, #tpu.memory_space<vmem>>, %arg12: memref<1x32xf32, #tpu.memory_space<vmem>>, %arg13: memref<32x32xf32, #tpu.memory_space<vmem>>, %arg14: memref<1x32xf32, #tpu.memory_space<vmem>>, %arg15: memref<1x16x32xf32, #tpu.memory_space<vmem>>) attributes {dimension_semantics = [#tpu.dimension_semantics<parallel>], iteration_bounds = array<i64: 2>, scalar_prefetch = 1 : i64, scratch_operands = 0 : i64, tpu.core_type = #tpu.core_type<tc>, window_params = [{transform_indices = @transform_0, window_bounds = array<i64: 1, 16, 32>}, {transform_indices = @transform_1, window_bounds = array<i64: 1, 16, 32>}, {pipeline_mode = #tpu.pipeline_mode<synchronous>, transform_indices = @transform_2, window_bounds = array<i64: 32, 16>}, {pipeline_mode = #tpu.pipeline_mode<synchronous>, transform_indices = @transform_3, window_bounds = array<i64: 1, 16>}, {pipeline_mode = #tpu.pipeline_mode<synchronous>, transform_indices = @transform_4, window_bounds = array<i64: 32, 32>}, {pipeline_mode = #tpu.pipeline_mode<synchronous>, transform_indices = @transform_5, window_bounds = array<i64: 1, 32>}, {pipeline_mode = #tpu.pipeline_mode<synchronous>, transform_indices = @transform_6, window_bounds = array<i64: 16, 16>}, {pipeline_mode = #tpu.pipeline_mode<synchronous>, transform_indices = @transform_7, window_bounds = array<i64: 1, 16>}, {pipeline_mode = #tpu.pipeline_mode<synchronous>, transform_indices = @transform_8, window_bounds = array<i64: 32, 32>}, {pipeline_mode = #tpu.pipeline_mode<synchronous>, transform_indices = @transform_9, window_bounds = array<i64: 16, 32>}, {pipeline_mode = #tpu.pipeline_mode<synchronous>, transform_indices = @transform_10, window_bounds = array<i64: 1, 32>}, {pipeline_mode = #tpu.pipeline_mode<synchronous>, transform_indices = @transform_11, window_bounds = array<i64: 32, 32>}, {pipeline_mode = #tpu.pipeline_mode<synchronous>, transform_indices = @transform_12, window_bounds = array<i64: 1, 32>}, {transform_indices = @transform_13, window_bounds = array<i64: 1, 16, 32>}]} {
    %0 = arith.index_cast %arg0 : i32 to index
    %c0 = arith.constant 0 : index
    %1 = memref.load %arg1[%0, %c0] : memref<2x2xi32, #tpu.memory_space<smem>>
    %c0_0 = arith.constant 0 : index
    %c0_1 = arith.constant 0 : index
    %c0_2 = arith.constant 0 : index
    %2 = vector.load %arg2[%c0_0, %c0_1, %c0_2] : memref<1x16x32xf32, #tpu.memory_space<vmem>>, vector<1x16x32xf32>
    %3 = vector.shape_cast %2 : vector<1x16x32xf32> to vector<16x32xf32>
    %c0_3 = arith.constant 0 : index
    %c0_4 = arith.constant 0 : index
    %c0_5 = arith.constant 0 : index
    %4 = vector.load %arg3[%c0_3, %c0_4, %c0_5] : memref<1x16x32xf32, #tpu.memory_space<vmem>>, vector<1x16x32xf32>
    %5 = vector.shape_cast %4 : vector<1x16x32xf32> to vector<16x32xf32>
    %c0_6 = arith.constant 0 : index
    %c0_7 = arith.constant 0 : index
    %6 = vector.load %arg4[%c0_6, %c0_7] : memref<32x16xf32, #tpu.memory_space<vmem>>, vector<32x16xf32>
    %cst = arith.constant dense<0.000000e+00> : vector<16x16xf32>
    %7 = tpu.matmul %5, %6, %cst {dimension_numbers = #tpu.dot_dimension_numbers<[1], [0], [0], [1], [0, 0, 1, 1], [], []>} : vector<16x32xf32>, vector<32x16xf32>, vector<16x16xf32> -> vector<16x16xf32>
    %c0_8 = arith.constant 0 : index
    %c0_9 = arith.constant 0 : index
    %8 = vector.load %arg5[%c0_8, %c0_9] : memref<1x16xf32, #tpu.memory_space<vmem>>, vector<1x16xf32>
    %9 = vector.broadcast %8 : vector<1x16xf32> to vector<16x16xf32>
    %10 = arith.addf %7, %9 : vector<16x16xf32>
    %c0_10 = arith.constant 0 : index
    %c0_11 = arith.constant 0 : index
    %11 = vector.load %arg6[%c0_10, %c0_11] : memref<32x32xf32, #tpu.memory_space<vmem>>, vector<32x32xf32>
    %cst_12 = arith.constant dense<0.000000e+00> : vector<16x32xf32>
    %12 = tpu.matmul %3, %11, %cst_12 {dimension_numbers = #tpu.dot_dimension_numbers<[1], [0], [0], [1], [0, 0, 1, 1], [], []>} : vector<16x32xf32>, vector<32x32xf32>, vector<16x32xf32> -> vector<16x32xf32>
    %c0_13 = arith.constant 0 : index
    %c0_14 = arith.constant 0 : index
    %13 = vector.load %arg7[%c0_13, %c0_14] : memref<1x32xf32, #tpu.memory_space<vmem>>, vector<1x32xf32>
    %14 = vector.broadcast %13 : vector<1x32xf32> to vector<16x32xf32>
    %15 = arith.addf %12, %14 : vector<16x32xf32>
    %16 = vector.extract_strided_slice %15 {offsets = [0, 0], sizes = [16, 16], strides = [1, 1]} : vector<16x32xf32> to vector<16x16xf32>
    %17 = vector.extract_strided_slice %15 {offsets = [0, 16], sizes = [16, 16], strides = [1, 1]} : vector<16x32xf32> to vector<16x16xf32>
    %18 = tpu.iota {dimensions = array<i32: 1>} : vector<1x16xi32>
    %19 = vector.broadcast %1 : i32 to vector<1x16xi32>
    %20 = arith.cmpi slt, %18, %19 : vector<1x16xi32>
    %cst_15 = arith.constant 0.000000e+00 : f32
    %cst_16 = arith.constant -1.000000e+30 : f32
    %21 = vector.broadcast %cst_15 : f32 to vector<1x16xf32>
    %22 = vector.broadcast %cst_16 : f32 to vector<1x16xf32>
    %23 = arith.select %20, %21, %22 : vector<1x16xi1>, vector<1x16xf32>
    %c0_17 = arith.constant 0 : index
    %c0_18 = arith.constant 0 : index
    %24 = vector.load %arg9[%c0_17, %c0_18] : memref<1x16xf32, #tpu.memory_space<vmem>>, vector<1x16xf32>
    %25 = vector.extract_strided_slice %10 {offsets = [0, 0], sizes = [16, 8], strides = [1, 1]} : vector<16x16xf32> to vector<16x8xf32>
    %26 = vector.extract_strided_slice %16 {offsets = [0, 0], sizes = [16, 8], strides = [1, 1]} : vector<16x16xf32> to vector<16x8xf32>
    %27 = vector.extract_strided_slice %17 {offsets = [0, 0], sizes = [16, 8], strides = [1, 1]} : vector<16x16xf32> to vector<16x8xf32>
    %cst_19 = arith.constant dense<0.000000e+00> : vector<16x16xf32>
    %28 = tpu.matmul %25, %26, %cst_19 {dimension_numbers = #tpu.dot_dimension_numbers<[1], [1], [0], [0], [0, 0, 1, 0], [], []>} : vector<16x8xf32>, vector<16x8xf32>, vector<16x16xf32> -> vector<16x16xf32>
    %29 = vector.broadcast %23 : vector<1x16xf32> to vector<16x16xf32>
    %30 = arith.addf %28, %29 : vector<16x16xf32>
    %cst_20 = arith.constant dense<0xFF800000> : vector<16xf32>
    %31 = vector.multi_reduction <maximumf>, %30, %cst_20 [1] : vector<16x16xf32> to vector<16xf32>
    %32 = vector.shape_cast %31 : vector<16xf32> to vector<16x1xf32>
    %33 = vector.broadcast %32 : vector<16x1xf32> to vector<16x16xf32>
    %34 = arith.subf %30, %33 : vector<16x16xf32>
    %35 = math.exp %34 : vector<16x16xf32>
    %cst_21 = arith.constant dense<0.000000e+00> : vector<16xf32>
    %36 = vector.multi_reduction <add>, %35, %cst_21 [1] : vector<16x16xf32> to vector<16xf32>
    %37 = vector.shape_cast %36 : vector<16xf32> to vector<16x1xf32>
    %38 = tpu.reciprocal %37 {approx = true} : vector<16x1xf32> -> vector<16x1xf32>
    %39 = vector.broadcast %38 : vector<16x1xf32> to vector<16x16xf32>
    %40 = arith.mulf %35, %39 : vector<16x16xf32>
    %cst_22 = arith.constant dense<0.000000e+00> : vector<16x8xf32>
    %41 = tpu.matmul %40, %27, %cst_22 {dimension_numbers = #tpu.dot_dimension_numbers<[1], [0], [0], [1], [0, 0, 1, 1], [], []>} : vector<16x16xf32>, vector<16x8xf32>, vector<16x8xf32> -> vector<16x8xf32>
    %c0_23 = arith.constant 0 : index
    %c0_24 = arith.constant 0 : index
    %42 = vector.load %arg8[%c0_23, %c0_24] : memref<16x16xf32, #tpu.memory_space<vmem>>, vector<8x16xf32>
    %cst_25 = arith.constant dense<0.000000e+00> : vector<16x16xf32>
    %43 = tpu.matmul %41, %42, %cst_25 {dimension_numbers = #tpu.dot_dimension_numbers<[1], [0], [0], [1], [0, 0, 1, 1], [], []>} : vector<16x8xf32>, vector<8x16xf32>, vector<16x16xf32> -> vector<16x16xf32>
    %44 = vector.broadcast %24 : vector<1x16xf32> to vector<16x16xf32>
    %45 = arith.addf %44, %43 : vector<16x16xf32>
    %46 = vector.extract_strided_slice %10 {offsets = [0, 8], sizes = [16, 8], strides = [1, 1]} : vector<16x16xf32> to vector<16x8xf32>
    %47 = vector.extract_strided_slice %16 {offsets = [0, 8], sizes = [16, 8], strides = [1, 1]} : vector<16x16xf32> to vector<16x8xf32>
    %48 = vector.extract_strided_slice %17 {offsets = [0, 8], sizes = [16, 8], strides = [1, 1]} : vector<16x16xf32> to vector<16x8xf32>
    %cst_26 = arith.constant dense<0.000000e+00> : vector<16x16xf32>
    %49 = tpu.matmul %46, %47, %cst_26 {dimension_numbers = #tpu.dot_dimension_numbers<[1], [1], [0], [0], [0, 0, 1, 0], [], []>} : vector<16x8xf32>, vector<16x8xf32>, vector<16x16xf32> -> vector<16x16xf32>
    %50 = vector.broadcast %23 : vector<1x16xf32> to vector<16x16xf32>
    %51 = arith.addf %49, %50 : vector<16x16xf32>
    %cst_27 = arith.constant dense<0xFF800000> : vector<16xf32>
    %52 = vector.multi_reduction <maximumf>, %51, %cst_27 [1] : vector<16x16xf32> to vector<16xf32>
    %53 = vector.shape_cast %52 : vector<16xf32> to vector<16x1xf32>
    %54 = vector.broadcast %53 : vector<16x1xf32> to vector<16x16xf32>
    %55 = arith.subf %51, %54 : vector<16x16xf32>
    %56 = math.exp %55 : vector<16x16xf32>
    %cst_28 = arith.constant dense<0.000000e+00> : vector<16xf32>
    %57 = vector.multi_reduction <add>, %56, %cst_28 [1] : vector<16x16xf32> to vector<16xf32>
    %58 = vector.shape_cast %57 : vector<16xf32> to vector<16x1xf32>
    %59 = tpu.reciprocal %58 {approx = true} : vector<16x1xf32> -> vector<16x1xf32>
    %60 = vector.broadcast %59 : vector<16x1xf32> to vector<16x16xf32>
    %61 = arith.mulf %56, %60 : vector<16x16xf32>
    %cst_29 = arith.constant dense<0.000000e+00> : vector<16x8xf32>
    %62 = tpu.matmul %61, %48, %cst_29 {dimension_numbers = #tpu.dot_dimension_numbers<[1], [0], [0], [1], [0, 0, 1, 1], [], []>} : vector<16x16xf32>, vector<16x8xf32>, vector<16x8xf32> -> vector<16x8xf32>
    %c8 = arith.constant 8 : index
    %c0_30 = arith.constant 0 : index
    %63 = vector.load %arg8[%c8, %c0_30] : memref<16x16xf32, #tpu.memory_space<vmem>>, vector<8x16xf32>
    %cst_31 = arith.constant dense<0.000000e+00> : vector<16x16xf32>
    %64 = tpu.matmul %62, %63, %cst_31 {dimension_numbers = #tpu.dot_dimension_numbers<[1], [0], [0], [1], [0, 0, 1, 1], [], []>} : vector<16x8xf32>, vector<8x16xf32>, vector<16x16xf32> -> vector<16x16xf32>
    %65 = arith.addf %45, %64 : vector<16x16xf32>
    %c0_32 = arith.constant 0 : index
    %c0_33 = arith.constant 0 : index
    %66 = vector.load %arg10[%c0_32, %c0_33] : memref<32x32xf32, #tpu.memory_space<vmem>>, vector<32x32xf32>
    %cst_34 = arith.constant dense<0.000000e+00> : vector<16x32xf32>
    %67 = tpu.matmul %5, %66, %cst_34 {dimension_numbers = #tpu.dot_dimension_numbers<[1], [0], [0], [1], [0, 0, 1, 1], [], []>} : vector<16x32xf32>, vector<32x32xf32>, vector<16x32xf32> -> vector<16x32xf32>
    %c0_35 = arith.constant 0 : index
    %c0_36 = arith.constant 0 : index
    %68 = vector.load %arg11[%c0_35, %c0_36] : memref<16x32xf32, #tpu.memory_space<vmem>>, vector<16x32xf32>
    %cst_37 = arith.constant dense<0.000000e+00> : vector<16x32xf32>
    %69 = tpu.matmul %65, %68, %cst_37 {dimension_numbers = #tpu.dot_dimension_numbers<[1], [0], [0], [1], [0, 0, 1, 1], [], []>} : vector<16x16xf32>, vector<16x32xf32>, vector<16x32xf32> -> vector<16x32xf32>
    %70 = arith.addf %67, %69 : vector<16x32xf32>
    %c0_38 = arith.constant 0 : index
    %c0_39 = arith.constant 0 : index
    %71 = vector.load %arg12[%c0_38, %c0_39] : memref<1x32xf32, #tpu.memory_space<vmem>>, vector<1x32xf32>
    %72 = vector.broadcast %71 : vector<1x32xf32> to vector<16x32xf32>
    %73 = arith.addf %70, %72 : vector<16x32xf32>
    %cst_40 = arith.constant 0.000000e+00 : f32
    %74 = vector.broadcast %cst_40 : f32 to vector<16x32xf32>
    %75 = arith.maximumf %73, %74 : vector<16x32xf32>
    %c0_41 = arith.constant 0 : index
    %c0_42 = arith.constant 0 : index
    %76 = vector.load %arg13[%c0_41, %c0_42] : memref<32x32xf32, #tpu.memory_space<vmem>>, vector<32x32xf32>
    %cst_43 = arith.constant dense<0.000000e+00> : vector<16x32xf32>
    %77 = tpu.matmul %75, %76, %cst_43 {dimension_numbers = #tpu.dot_dimension_numbers<[1], [0], [0], [1], [0, 0, 1, 1], [], []>} : vector<16x32xf32>, vector<32x32xf32>, vector<16x32xf32> -> vector<16x32xf32>
    %c0_44 = arith.constant 0 : index
    %c0_45 = arith.constant 0 : index
    %78 = vector.load %arg14[%c0_44, %c0_45] : memref<1x32xf32, #tpu.memory_space<vmem>>, vector<1x32xf32>
    %79 = vector.broadcast %78 : vector<1x32xf32> to vector<16x32xf32>
    %80 = arith.addf %77, %79 : vector<16x32xf32>
    %81 = arith.addf %5, %80 : vector<16x32xf32>
    %c0_46 = arith.constant 0 : index
    %c0_47 = arith.constant 0 : index
    %c0_48 = arith.constant 0 : index
    %82 = vector.load %arg15[%c0_46, %c0_47, %c0_48] : memref<1x16x32xf32, #tpu.memory_space<vmem>>, vector<1x16x32xf32>
    %83 = vector.shape_cast %82 : vector<1x16x32xf32> to vector<16x32xf32>
    %84 = vector.shape_cast %81 : vector<16x32xf32> to vector<1x16x32xf32>
    tpu.vector_store %arg15[%c0_46, %c0_47, %c0_48], %84 {strides = array<i32>} : memref<1x16x32xf32, #tpu.memory_space<vmem>>, vector<1x16x32xf32>,
    return
  }
  func.func @transform_0(%arg0: i32, %arg1: memref<2x2xi32, #tpu.memory_space<smem>>) -> (i32, i32, i32) {
    %c0_i32 = arith.constant 0 : i32
    %c0_i32_0 = arith.constant 0 : i32
    %c0_i32_1 = arith.constant 0 : i32
    return %arg0, %c0_i32, %c0_i32_0 : i32, i32, i32
  }
  func.func @transform_1(%arg0: i32, %arg1: memref<2x2xi32, #tpu.memory_space<smem>>) -> (i32, i32, i32) {
    %c0_i32 = arith.constant 0 : i32
    %c0_i32_0 = arith.constant 0 : i32
    %c0_i32_1 = arith.constant 0 : i32
    return %arg0, %c0_i32, %c0_i32_0 : i32, i32, i32
  }
  func.func @transform_2(%arg0: i32, %arg1: memref<2x2xi32, #tpu.memory_space<smem>>) -> (i32, i32) {
    %c0_i32 = arith.constant 0 : i32
    %c0_i32_0 = arith.constant 0 : i32
    %c0_i32_1 = arith.constant 0 : i32
    return %c0_i32, %c0_i32_0 : i32, i32
  }
  func.func @transform_3(%arg0: i32, %arg1: memref<2x2xi32, #tpu.memory_space<smem>>) -> (i32, i32) {
    %c0_i32 = arith.constant 0 : i32
    %c0_i32_0 = arith.constant 0 : i32
    %c0_i32_1 = arith.constant 0 : i32
    return %c0_i32, %c0_i32_0 : i32, i32
  }
  func.func @transform_4(%arg0: i32, %arg1: memref<2x2xi32, #tpu.memory_space<smem>>) -> (i32, i32) {
    %c0_i32 = arith.constant 0 : i32
    %c0_i32_0 = arith.constant 0 : i32
    %c0_i32_1 = arith.constant 0 : i32
    return %c0_i32, %c0_i32_0 : i32, i32
  }
  func.func @transform_5(%arg0: i32, %arg1: memref<2x2xi32, #tpu.memory_space<smem>>) -> (i32, i32) {
    %c0_i32 = arith.constant 0 : i32
    %c0_i32_0 = arith.constant 0 : i32
    %c0_i32_1 = arith.constant 0 : i32
    return %c0_i32, %c0_i32_0 : i32, i32
  }
  func.func @transform_6(%arg0: i32, %arg1: memref<2x2xi32, #tpu.memory_space<smem>>) -> (i32, i32) {
    %c0_i32 = arith.constant 0 : i32
    %c0_i32_0 = arith.constant 0 : i32
    %c0_i32_1 = arith.constant 0 : i32
    return %c0_i32, %c0_i32_0 : i32, i32
  }
  func.func @transform_7(%arg0: i32, %arg1: memref<2x2xi32, #tpu.memory_space<smem>>) -> (i32, i32) {
    %c0_i32 = arith.constant 0 : i32
    %c0_i32_0 = arith.constant 0 : i32
    %c0_i32_1 = arith.constant 0 : i32
    return %c0_i32, %c0_i32_0 : i32, i32
  }
  func.func @transform_8(%arg0: i32, %arg1: memref<2x2xi32, #tpu.memory_space<smem>>) -> (i32, i32) {
    %c0_i32 = arith.constant 0 : i32
    %c0_i32_0 = arith.constant 0 : i32
    %c0_i32_1 = arith.constant 0 : i32
    return %c0_i32, %c0_i32_0 : i32, i32
  }
  func.func @transform_9(%arg0: i32, %arg1: memref<2x2xi32, #tpu.memory_space<smem>>) -> (i32, i32) {
    %c0_i32 = arith.constant 0 : i32
    %c0_i32_0 = arith.constant 0 : i32
    %c0_i32_1 = arith.constant 0 : i32
    return %c0_i32, %c0_i32_0 : i32, i32
  }
  func.func @transform_10(%arg0: i32, %arg1: memref<2x2xi32, #tpu.memory_space<smem>>) -> (i32, i32) {
    %c0_i32 = arith.constant 0 : i32
    %c0_i32_0 = arith.constant 0 : i32
    %c0_i32_1 = arith.constant 0 : i32
    return %c0_i32, %c0_i32_0 : i32, i32
  }
  func.func @transform_11(%arg0: i32, %arg1: memref<2x2xi32, #tpu.memory_space<smem>>) -> (i32, i32) {
    %c0_i32 = arith.constant 0 : i32
    %c0_i32_0 = arith.constant 0 : i32
    %c0_i32_1 = arith.constant 0 : i32
    return %c0_i32, %c0_i32_0 : i32, i32
  }
  func.func @transform_12(%arg0: i32, %arg1: memref<2x2xi32, #tpu.memory_space<smem>>) -> (i32, i32) {
    %c0_i32 = arith.constant 0 : i32
    %c0_i32_0 = arith.constant 0 : i32
    %c0_i32_1 = arith.constant 0 : i32
    return %c0_i32, %c0_i32_0 : i32, i32
  }
  func.func @transform_13(%arg0: i32, %arg1: memref<2x2xi32, #tpu.memory_space<smem>>) -> (i32, i32, i32) {
    %c0_i32 = arith.constant 0 : i32
    %c0_i32_0 = arith.constant 0 : i32
    %c0_i32_1 = arith.constant 0 : i32
    return %arg0, %c0_i32, %c0_i32_0 : i32, i32, i32
  }
}

</mosaic_0001>

<llo_original>
// kernel: tpu_custom_call.1
$region0: #{tpu_custom_call.1}
  #allocation0 [shape = 'u32[]', space=smem, size = 0x4, offset = 0x4, fixed_abs, tag = 'smem constant byte address 0x4 - core index']
  #allocation1 [shape = 'u32[144,128]{1,0:T(1,128)}', space=vmem, size = 0x12000, scoped, tag = 'internal scratch']
  #allocation2 [shape = 's32[1]{0}', space=sflag, size = 0x4, scoped, tag = 'scoped memory for tpu_custom_call.1']
  #allocation3 [shape = 'u8[1024]{0}', space=smem, size = 0x400, scoped, tag = 'prefetched SMEM operand 0']
  %s0 = inlined_call_operand.hbm [shape: s32[2,2], index: 0, kind: input, shape index: {}]
  %s1 = inlined_call_operand.vmem [shape: f32[2,16,32], index: 1, kind: input, shape index: {}]
  %s2 = inlined_call_operand.hbm [shape: f32[2,16,32], index: 2, kind: input, shape index: {}]
  %s3 = inlined_call_operand.vmem [shape: f32[32,16], index: 3, kind: input, shape index: {}]
  %s4 = inlined_call_operand.hbm [shape: f32[1,16], index: 4, kind: input, shape index: {}]
  %s5 = inlined_call_operand.hbm [shape: f32[32,32], index: 5, kind: input, shape index: {}]
  %s6 = inlined_call_operand.hbm [shape: f32[1,32], index: 6, kind: input, shape index: {}]
  %s7 = inlined_call_operand.hbm [shape: f32[16,16], index: 7, kind: input, shape index: {}]
  %s8 = inlined_call_operand.hbm [shape: f32[1,16], index: 8, kind: input, shape index: {}]
  %s9 = inlined_call_operand.vmem [shape: f32[32,32], index: 9, kind: input, shape index: {}]
  %s10 = inlined_call_operand.hbm [shape: f32[16,32], index: 10, kind: input, shape index: {}]
  %s11 = inlined_call_operand.vmem [shape: f32[1,32], index: 11, kind: input, shape index: {}]
  %s12 = inlined_call_operand.hbm [shape: f32[32,32], index: 12, kind: input, shape index: {}]
  %s13 = inlined_call_operand.vmem [shape: f32[1,32], index: 13, kind: input, shape index: {}]
  %s14 = inlined_call_operand.hbm [shape: f32[2,16,32], index: 14, kind: output, shape index: {}]
  %s15 = sld [smem:[#allocation0]]
  $region117: #{tpu_custom_call.1} parent=0
    _
  %s17 = ssub.s32 1, %s15
  %s18 = scalar_select 0, %s17, %s15
  %20 = dma.hbm_to_smem %s0, 32, [#allocation3], [#allocation2]
  %21 = dma.done [#allocation2], 32
  %22 = sfence
  $region1: #{tpu_custom_call.1} parent=0
    #allocation4 [shape = 'u8[16384]{0}', space=vmem, size = 0x4000, scoped, tag = 'input window, operand 2']
    #allocation5 [shape = 's32[2]{0}', space=sflag, size = 0x8, scoped, tag = 'scoped memory for tpu_custom_call.1']
    #allocation6 [shape = 's32[2]{0}', space=sflag, size = 0x8, scoped, tag = 'scoped memory for tpu_custom_call.1']
    #allocation7 [shape = 'u8[512]{0}', space=vmem, size = 0x400, scoped, tag = 'input window, operand 4, single buffered']
    #allocation8 [shape = 's32[1]{0}', space=sflag, size = 0x4, scoped, tag = 'scoped memory for tpu_custom_call.1']
    #allocation9 [shape = 'u8[16384]{0}', space=vmem, size = 0x4000, scoped, tag = 'input window, operand 5, single buffered']
    #allocation10 [shape = 'u8[512]{0}', space=vmem, size = 0x400, scoped, tag = 'input window, operand 6, single buffered']
    #allocation11 [shape = 's32[1]{0}', space=sflag, size = 0x4, scoped, tag = 'scoped memory for tpu_custom_call.1']
    #allocation12 [shape = 'u8[8192]{0}', space=vmem, size = 0x2000, scoped, tag = 'input window, operand 7, single buffered']
    #allocation13 [shape = 'u8[512]{0}', space=vmem, size = 0x400, scoped, tag = 'input window, operand 8, single buffered']
    #allocation14 [shape = 's32[1]{0}', space=sflag, size = 0x4, scoped, tag = 'scoped memory for tpu_custom_call.1']
    #allocation15 [shape = 'u8[8192]{0}', space=vmem, size = 0x2000, scoped, tag = 'input window, operand 10, single buffered']
    #allocation16 [shape = 'u8[16384]{0}', space=vmem, size = 0x4000, scoped, tag = 'input window, operand 12, single buffered']
    #allocation17 [shape = 's32[1]{0}', space=sflag, size = 0x4, scoped, tag = 'scoped memory for tpu_custom_call.1']
    #allocation18 [shape = 'u8[16384]{0}', space=vmem, size = 0x4000, scoped, tag = 'output window, operand 0']
    %23 = vsyncpa [#allocation5], 0
    %s24 = scalar_lea.sflag [#allocation5], 1
    %25 = vsyncpa %s24, 0
    %26 = vsyncpa [#allocation8], 0
    %27 = vsyncpa [#allocation11], 0
    %28 = vsyncpa [#allocation14], 0
    %29 = vsyncpa [#allocation17], 0
    %30 = vsyncpa [#allocation6], 0
    %s31 = scalar_lea.sflag [#allocation6], 1
    %32 = vsyncpa %s31, 0
    loop: start=0, step=1, limit=4
    $region2: #{tpu_custom_call.1} parent=1 // loop_pre_header
      _
    $region3: #{tpu_custom_call.1} parent=1 // loop_header
      %s34 = sphi 0, %s38
      %p35 = scmp.ge.s32.totalorder %s34, 4
      %s44 = sphi 0, %s46
      %s47 = sphi 0, %s44
      %s48 = sphi 0, %s47
      %s64 = sphi 0, %s48
      %s70 = sphi 0, %s72
      %s73 = sphi 0, %s70
      %s74 = sphi 0, %s73
      %s90 = sphi 0, %s74
      %s94 = sphi 0, %s94
      %s96 = sphi 0, %s94
      %s97 = sphi 0, %s96
      %s111 = sphi 0, %s97
      %s115 = sphi 0, %s115
      %s117 = sphi 0, %s115
      %s118 = sphi 0, %s117
      %s132 = sphi 0, %s118
      %s136 = sphi 0, %s136
      %s138 = sphi 0, %s136
      %s139 = sphi 0, %s138
      %s153 = sphi 0, %s139
      %s157 = sphi 0, %s157
      %s159 = sphi 0, %s157
      %s160 = sphi 0, %s159
      %s174 = sphi 0, %s160
      %s178 = sphi 0, %s178
      %s180 = sphi 0, %s178
      %s181 = sphi 0, %s180
      %s195 = sphi 0, %s181
      %s199 = sphi 0, %s199
      %s201 = sphi 0, %s199
      %s202 = sphi 0, %s201
      %s216 = sphi 0, %s202
      %s220 = sphi 0, %s220
      %s222 = sphi 0, %s220
      %s223 = sphi 0, %s222
      %s237 = sphi 0, %s223
      %s241 = sphi 0, %s241
      %s243 = sphi 0, %s241
      %s244 = sphi 0, %s243
      %s258 = sphi 0, %s244
      %s262 = sphi 0, %s262
      %s264 = sphi 0, %s262
      %s265 = sphi 0, %s264
      %s279 = sphi 0, %s265
      %s283 = sphi 0, %s283
      %s285 = sphi 0, %s283
      %s286 = sphi 0, %s285
      %s300 = sphi 0, %s286
      %s304 = sphi 0, %s304
      %s306 = sphi 0, %s304
      %s307 = sphi 0, %s306
      %s321 = sphi 0, %s307
      %s327 = sphi 0, %s329
      %s330 = sphi 0, %s327
      %s331 = sphi 0, %s330
      %s347 = sphi 0, %s331
    $region4: #{tpu_custom_call.1} parent=1 // loop_header_branch
      %37 = sbr.rel (%p35) target = $region8
    $region5: #{tpu_custom_call.1} parent=1 // loop_body
      %s39 = ssub.s32 %s34, 1
      %s40 = ssub.s32 %s34, 2
      %s41 = sadd.s32 %s34, 1
      %s42 = ssub.s32 %s34, %s41
      %p43 = scmp.eq.s32.totalorder %s42, 0
      %s45 = sadd.s32 %s44, 1
      %s46 = scalar_select %p43, %s44, %s45
      %p49 = pneg %p43
      %p50 = scmp.eq.s32.totalorder %s34, 1
      %p51 = por %p49, %p50
      %p52 = scmp.ne.s32.totalorder %s44, %s47
      %p53 = scmp.eq.s32.totalorder %s34, 0
      %p54 = por %p52, %p53
      %p55 = scmp.ne.s32.totalorder %s44, %s47
      %p56 = scmp.eq.s32.totalorder %s39, 1
      %p57 = por %p55, %p56
      %p58 = scmp.ne.s32.totalorder %s47, %s48
      %p59 = scmp.eq.s32.totalorder %s39, 0
      %p60 = por %p58, %p59
      %p61 = scmp.ne.s32.totalorder %s47, %s48
      %p62 = scmp.eq.s32.totalorder %s40, 1
      %p63 = por %p61, %p62
      %p65 = scmp.ne.s32.totalorder %s48, %s64
      %p66 = scmp.eq.s32.totalorder %s40, 0
      %p67 = por %p65, %p66
      %s68 = ssub.s32 %s34, %s41
      %p69 = scmp.eq.s32.totalorder %s68, 0
      %s71 = sadd.s32 %s70, 1
      %s72 = scalar_select %p69, %s70, %s71
      %p75 = pneg %p69
      %p76 = scmp.eq.s32.totalorder %s34, 1
      %p77 = por %p75, %p76
      %p78 = scmp.ne.s32.totalorder %s70, %s73
      %p79 = scmp.eq.s32.totalorder %s34, 0
      %p80 = por %p78, %p79
      %p81 = scmp.ne.s32.totalorder %s70, %s73
      %p82 = scmp.eq.s32.totalorder %s39, 1
      %p83 = por %p81, %p82
      %p84 = scmp.ne.s32.totalorder %s73, %s74
      %p85 = scmp.eq.s32.totalorder %s39, 0
      %p86 = por %p84, %p85
      %p87 = scmp.ne.s32.totalorder %s73, %s74
      %p88 = scmp.eq.s32.totalorder %s40, 1
      %p89 = por %p87, %p88
      %p91 = scmp.ne.s32.totalorder %s74, %s90
      %p92 = scmp.eq.s32.totalorder %s40, 0
      %p93 = por %p91, %p92
      %s95 = sadd.s32 %s94, 1
      %p98 = scmp.eq.s32.totalorder %s34, 1
      %p99 = scmp.ne.s32.totalorder %s94, %s96
      %p100 = scmp.eq.s32.totalorder %s34, 0
      %p101 = por %p99, %p100
      %p102 = scmp.ne.s32.totalorder %s94, %s96
      %p103 = scmp.eq.s32.totalorder %s39, 1
      %p104 = por %p102, %p103
      %p105 = scmp.ne.s32.totalorder %s96, %s97
      %p106 = scmp.eq.s32.totalorder %s39, 0
      %p107 = por %p105, %p106
      %p108 = scmp.ne.s32.totalorder %s96, %s97
      %p109 = scmp.eq.s32.totalorder %s40, 1
      %p110 = por %p108, %p109
      %p112 = scmp.ne.s32.totalorder %s97, %s111
      %p113 = scmp.eq.s32.totalorder %s40, 0
      %p114 = por %p112, %p113
      %s116 = sadd.s32 %s115, 1
      %p119 = scmp.eq.s32.totalorder %s34, 1
      %p120 = scmp.ne.s32.totalorder %s115, %s117
      %p121 = scmp.eq.s32.totalorder %s34, 0
      %p122 = por %p120, %p121
      %p123 = scmp.ne.s32.totalorder %s115, %s117
      %p124 = scmp.eq.s32.totalorder %s39, 1
      %p125 = por %p123, %p124
      %p126 = scmp.ne.s32.totalorder %s117, %s118
      %p127 = scmp.eq.s32.totalorder %s39, 0
      %p128 = por %p126, %p127
      %p129 = scmp.ne.s32.totalorder %s117, %s118
      %p130 = scmp.eq.s32.totalorder %s40, 1
      %p131 = por %p129, %p130
      %p133 = scmp.ne.s32.totalorder %s118, %s132
      %p134 = scmp.eq.s32.totalorder %s40, 0
      %p135 = por %p133, %p134
      %s137 = sadd.s32 %s136, 1
      %p140 = scmp.eq.s32.totalorder %s34, 1
      %p141 = scmp.ne.s32.totalorder %s136, %s138
      %p142 = scmp.eq.s32.totalorder %s34, 0
      %p143 = por %p141, %p142
      %p144 = scmp.ne.s32.totalorder %s136, %s138
      %p145 = scmp.eq.s32.totalorder %s39, 1
      %p146 = por %p144, %p145
      %p147 = scmp.ne.s32.totalorder %s138, %s139
      %p148 = scmp.eq.s32.totalorder %s39, 0
      %p149 = por %p147, %p148
      %p150 = scmp.ne.s32.totalorder %s138, %s139
      %p151 = scmp.eq.s32.totalorder %s40, 1
      %p152 = por %p150, %p151
      %p154 = scmp.ne.s32.totalorder %s139, %s153
      %p155 = scmp.eq.s32.totalorder %s40, 0
      %p156 = por %p154, %p155
      %s158 = sadd.s32 %s157, 1
      %p161 = scmp.eq.s32.totalorder %s34, 1
      %p162 = scmp.ne.s32.totalorder %s157, %s159
      %p163 = scmp.eq.s32.totalorder %s34, 0
      %p164 = por %p162, %p163
      %p165 = scmp.ne.s32.totalorder %s157, %s159
      %p166 = scmp.eq.s32.totalorder %s39, 1
      %p167 = por %p165, %p166
      %p168 = scmp.ne.s32.totalorder %s159, %s160
      %p169 = scmp.eq.s32.totalorder %s39, 0
      %p170 = por %p168, %p169
      %p171 = scmp.ne.s32.totalorder %s159, %s160
      %p172 = scmp.eq.s32.totalorder %s40, 1
      %p173 = por %p171, %p172
      %p175 = scmp.ne.s32.totalorder %s160, %s174
      %p176 = scmp.eq.s32.totalorder %s40, 0
      %p177 = por %p175, %p176
      %s179 = sadd.s32 %s178, 1
      %p182 = scmp.eq.s32.totalorder %s34, 1
      %p183 = scmp.ne.s32.totalorder %s178, %s180
      %p184 = scmp.eq.s32.totalorder %s34, 0
      %p185 = por %p183, %p184
      %p186 = scmp.ne.s32.totalorder %s178, %s180
      %p187 = scmp.eq.s32.totalorder %s39, 1
      %p188 = por %p186, %p187
      %p189 = scmp.ne.s32.totalorder %s180, %s181
      %p190 = scmp.eq.s32.totalorder %s39, 0
      %p191 = por %p189, %p190
      %p192 = scmp.ne.s32.totalorder %s180, %s181
      %p193 = scmp.eq.s32.totalorder %s40, 1
      %p194 = por %p192, %p193
      %p196 = scmp.ne.s32.totalorder %s181, %s195
      %p197 = scmp.eq.s32.totalorder %s40, 0
      %p198 = por %p196, %p197
      %s200 = sadd.s32 %s199, 1
      %p203 = scmp.eq.s32.totalorder %s34, 1
      %p204 = scmp.ne.s32.totalorder %s199, %s201
      %p205 = scmp.eq.s32.totalorder %s34, 0
      %p206 = por %p204, %p205
      %p207 = scmp.ne.s32.totalorder %s199, %s201
      %p208 = scmp.eq.s32.totalorder %s39, 1
      %p209 = por %p207, %p208
      %p210 = scmp.ne.s32.totalorder %s201, %s202
      %p211 = scmp.eq.s32.totalorder %s39, 0
      %p212 = por %p210, %p211
      %p213 = scmp.ne.s32.totalorder %s201, %s202
      %p214 = scmp.eq.s32.totalorder %s40, 1
      %p215 = por %p213, %p214
      %p217 = scmp.ne.s32.totalorder %s202, %s216
      %p218 = scmp.eq.s32.totalorder %s40, 0
      %p219 = por %p217, %p218
      %s221 = sadd.s32 %s220, 1
      %p224 = scmp.eq.s32.totalorder %s34, 1
      %p225 = scmp.ne.s32.totalorder %s220, %s222
      %p226 = scmp.eq.s32.totalorder %s34, 0
      %p227 = por %p225, %p226
      %p228 = scmp.ne.s32.totalorder %s220, %s222
      %p229 = scmp.eq.s32.totalorder %s39, 1
      %p230 = por %p228, %p229
      %p231 = scmp.ne.s32.totalorder %s222, %s223
      %p232 = scmp.eq.s32.totalorder %s39, 0
      %p233 = por %p231, %p232
      %p234 = scmp.ne.s32.totalorder %s222, %s223
      %p235 = scmp.eq.s32.totalorder %s40, 1
      %p236 = por %p234, %p235
      %p238 = scmp.ne.s32.totalorder %s223, %s237
      %p239 = scmp.eq.s32.totalorder %s40, 0
      %p240 = por %p238, %p239
      %s242 = sadd.s32 %s241, 1
      %p245 = scmp.eq.s32.totalorder %s34, 1
      %p246 = scmp.ne.s32.totalorder %s241, %s243
      %p247 = scmp.eq.s32.totalorder %s34, 0
      %p248 = por %p246, %p247
      %p249 = scmp.ne.s32.totalorder %s241, %s243
      %p250 = scmp.eq.s32.totalorder %s39, 1
      %p251 = por %p249, %p250
      %p252 = scmp.ne.s32.totalorder %s243, %s244
      %p253 = scmp.eq.s32.totalorder %s39, 0
      %p254 = por %p252, %p253
      %p255 = scmp.ne.s32.totalorder %s243, %s244
      %p256 = scmp.eq.s32.totalorder %s40, 1
      %p257 = por %p255, %p256
      %p259 = scmp.ne.s32.totalorder %s244, %s258
      %p260 = scmp.eq.s32.totalorder %s40, 0
      %p261 = por %p259, %p260
      %s263 = sadd.s32 %s262, 1
      %p266 = scmp.eq.s32.totalorder %s34, 1
      %p267 = scmp.ne.s32.totalorder %s262, %s264
      %p268 = scmp.eq.s32.totalorder %s34, 0
      %p269 = por %p267, %p268
      %p270 = scmp.ne.s32.totalorder %s262, %s264
      %p271 = scmp.eq.s32.totalorder %s39, 1
      %p272 = por %p270, %p271
      %p273 = scmp.ne.s32.totalorder %s264, %s265
      %p274 = scmp.eq.s32.totalorder %s39, 0
      %p275 = por %p273, %p274
      %p276 = scmp.ne.s32.totalorder %s264, %s265
      %p277 = scmp.eq.s32.totalorder %s40, 1
      %p278 = por %p276, %p277
      %p280 = scmp.ne.s32.totalorder %s265, %s279
      %p281 = scmp.eq.s32.totalorder %s40, 0
      %p282 = por %p280, %p281
      %s284 = sadd.s32 %s283, 1
      %p287 = scmp.eq.s32.totalorder %s34, 1
      %p288 = scmp.ne.s32.totalorder %s283, %s285
      %p289 = scmp.eq.s32.totalorder %s34, 0
      %p290 = por %p288, %p289
      %p291 = scmp.ne.s32.totalorder %s283, %s285
      %p292 = scmp.eq.s32.totalorder %s39, 1
      %p293 = por %p291, %p292
      %p294 = scmp.ne.s32.totalorder %s285, %s286
      %p295 = scmp.eq.s32.totalorder %s39, 0
      %p296 = por %p294, %p295
      %p297 = scmp.ne.s32.totalorder %s285, %s286
      %p298 = scmp.eq.s32.totalorder %s40, 1
      %p299 = por %p297, %p298
      %p301 = scmp.ne.s32.totalorder %s286, %s300
      %p302 = scmp.eq.s32.totalorder %s40, 0
      %p303 = por %p301, %p302
      %s305 = sadd.s32 %s304, 1
      %p308 = scmp.eq.s32.totalorder %s34, 1
      %p309 = scmp.ne.s32.totalorder %s304, %s306
      %p310 = scmp.eq.s32.totalorder %s34, 0
      %p311 = por %p309, %p310
      %p312 = scmp.ne.s32.totalorder %s304, %s306
      %p313 = scmp.eq.s32.totalorder %s39, 1
      %p314 = por %p312, %p313
      %p315 = scmp.ne.s32.totalorder %s306, %s307
      %p316 = scmp.eq.s32.totalorder %s39, 0
      %p317 = por %p315, %p316
      %p318 = scmp.ne.s32.totalorder %s306, %s307
      %p319 = scmp.eq.s32.totalorder %s40, 1
      %p320 = por %p318, %p319
      %p322 = scmp.ne.s32.totalorder %s307, %s321
      %p323 = scmp.eq.s32.totalorder %s40, 0
      %p324 = por %p322, %p323
      %s325 = ssub.s32 %s34, %s41
      %p326 = scmp.eq.s32.totalorder %s325, 0
      %s328 = sadd.s32 %s327, 1
      %s329 = scalar_select %p326, %s327, %s328
      %p332 = pneg %p326
      %p333 = scmp.eq.s32.totalorder %s34, 1
      %p334 = por %p332, %p333
      %p335 = scmp.ne.s32.totalorder %s327, %s330
      %p336 = scmp.eq.s32.totalorder %s34, 0
      %p337 = por %p335, %p336
      %p338 = scmp.ne.s32.totalorder %s327, %s330
      %p339 = scmp.eq.s32.totalorder %s39, 1
      %p340 = por %p338, %p339
      %p341 = scmp.ne.s32.totalorder %s330, %s331
      %p342 = scmp.eq.s32.totalorder %s39, 0
      %p343 = por %p341, %p342
      %p344 = scmp.ne.s32.totalorder %s330, %s331
      %p345 = scmp.eq.s32.totalorder %s40, 1
      %p346 = por %p344, %p345
      %p348 = scmp.ne.s32.totalorder %s331, %s347
      %p349 = scmp.eq.s32.totalorder %s40, 0
      %p350 = por %p348, %p349
      %p351 = scmp.le.s32.totalorder 1, %s34
      %p352 = scmp.lt.s32.totalorder %s34, 3
      %p353 = pnand %p351, %p352
      %p354 = pneg %p353
      // Predicated region
      $region9: #{tpu_custom_call.1} parent=5 // pred_check
        _
      $region10: #{tpu_custom_call.1} parent=5 // pred_check_branch
        %356 = sbr.rel (%p353) target = $region12
      $region11: #{tpu_custom_call.1} parent=5 // pred_region
        %s357 = ssub.s32 %s34, 1
        // Predicated region
        $region13: #{tpu_custom_call.1} parent=11 // pred_check
          %p358 = pneg %p107
        $region14: #{tpu_custom_call.1} parent=11 // pred_check_branch
          %360 = sbr.rel (%p358) target = $region16
        $region15: #{tpu_custom_call.1} parent=11 // pred_region
          _
        $region16: #{tpu_custom_call.1} parent=11 // pred_fallthru
          _
        // Predicated region
        $region17: #{tpu_custom_call.1} parent=11 // pred_check
          %p361 = pneg %p128
        $region18: #{tpu_custom_call.1} parent=11 // pred_check_branch
          %363 = sbr.rel (%p361) target = $region20
        $region19: #{tpu_custom_call.1} parent=11 // pred_region
          %s365 = ssub.s32 16, 16
          %366 = vsyncadd [#allocation8], %s365
          %s368 = sshll.u32 [#allocation7], 4
          %s369 = int_to_ptr.vmem [resolvable:$true] %s368
          %371 = dma.hbm_to_vmem [thread:$0]  %s4, 16, %s369, [#allocation8]
        $region20: #{tpu_custom_call.1} parent=11 // pred_fallthru
          _
        // Predicated region
        $region21: #{tpu_custom_call.1} parent=11 // pred_check
          %p372 = pneg %p149
        $region22: #{tpu_custom_call.1} parent=11 // pred_check_branch
          %374 = sbr.rel (%p372) target = $region24
        $region23: #{tpu_custom_call.1} parent=11 // pred_region
          %s376 = ssub.s32 512, 512
          %377 = vsyncadd [#allocation8], %s376
          %s378 = sshll.u32 [#allocation9], 4
          %s379 = int_to_ptr.vmem [resolvable:$true] %s378
          %384 = dma.hbm_to_vmem [thread:$0]  %s5, 512, %s379, [#allocation8], 128, 128, 8
        $region24: #{tpu_custom_call.1} parent=11 // pred_fallthru
          _
        // Predicated region
        $region25: #{tpu_custom_call.1} parent=11 // pred_check
          %p385 = pneg %p170
        $region26: #{tpu_custom_call.1} parent=11 // pred_check_branch
          %387 = sbr.rel (%p385) target = $region28
        $region27: #{tpu_custom_call.1} parent=11 // pred_region
          %s389 = ssub.s32 16, 16
          %390 = vsyncadd [#allocation11], %s389
          %s392 = sshll.u32 [#allocation10], 4
          %s393 = int_to_ptr.vmem [resolvable:$true] %s392
          %395 = dma.hbm_to_vmem [thread:$0]  %s6, 16, %s393, [#allocation11]
        $region28: #{tpu_custom_call.1} parent=11 // pred_fallthru
          _
        // Predicated region
        $region29: #{tpu_custom_call.1} parent=11 // pred_check
          %p396 = pneg %p191
        $region30: #{tpu_custom_call.1} parent=11 // pred_check_branch
          %398 = sbr.rel (%p396) target = $region32
        $region31: #{tpu_custom_call.1} parent=11 // pred_region
          %s400 = ssub.s32 256, 256
          %401 = vsyncadd [#allocation11], %s400
          %s402 = sshll.u32 [#allocation12], 4
          %s403 = int_to_ptr.vmem [resolvable:$true] %s402
          %408 = dma.hbm_to_vmem [thread:$0]  %s7, 256, %s403, [#allocation11], 128, 128, 8
        $region32: #{tpu_custom_call.1} parent=11 // pred_fallthru
          _
        // Predicated region
        $region33: #{tpu_custom_call.1} parent=11 // pred_check
          %p409 = pneg %p212
        $region34: #{tpu_custom_call.1} parent=11 // pred_check_branch
          %411 = sbr.rel (%p409) target = $region36
        $region35: #{tpu_custom_call.1} parent=11 // pred_region
          %s413 = ssub.s32 16, 16
          %414 = vsyncadd [#allocation14], %s413
          %s416 = sshll.u32 [#allocation13], 4
          %s417 = int_to_ptr.vmem [resolvable:$true] %s416
          %419 = dma.hbm_to_vmem [thread:$0]  %s8, 16, %s417, [#allocation14]
        $region36: #{tpu_custom_call.1} parent=11 // pred_fallthru
          _
        // Predicated region
        $region37: #{tpu_custom_call.1} parent=11 // pred_check
          %p420 = pneg %p233
        $region38: #{tpu_custom_call.1} parent=11 // pred_check_branch
          %422 = sbr.rel (%p420) target = $region40
        $region39: #{tpu_custom_call.1} parent=11 // pred_region
          _
        $region40: #{tpu_custom_call.1} parent=11 // pred_fallthru
          _
        // Predicated region
        $region41: #{tpu_custom_call.1} parent=11 // pred_check
          %p423 = pneg %p254
        $region42: #{tpu_custom_call.1} parent=11 // pred_check_branch
          %425 = sbr.rel (%p423) target = $region44
        $region43: #{tpu_custom_call.1} parent=11 // pred_region
          %s427 = ssub.s32 256, 256
          %428 = vsyncadd [#allocation14], %s427
          %s429 = sshll.u32 [#allocation15], 4
          %s430 = int_to_ptr.vmem [resolvable:$true] %s429
          %435 = dma.hbm_to_vmem [thread:$0]  %s10, 256, %s430, [#allocation14], 128, 128, 8
        $region44: #{tpu_custom_call.1} parent=11 // pred_fallthru
          _
        // Predicated region
        $region45: #{tpu_custom_call.1} parent=11 // pred_check
          %p436 = pneg %p275
        $region46: #{tpu_custom_call.1} parent=11 // pred_check_branch
          %438 = sbr.rel (%p436) target = $region48
        $region47: #{tpu_custom_call.1} parent=11 // pred_region
          _
        $region48: #{tpu_custom_call.1} parent=11 // pred_fallthru
          _
        // Predicated region
        $region49: #{tpu_custom_call.1} parent=11 // pred_check
          %p439 = pneg %p296
        $region50: #{tpu_custom_call.1} parent=11 // pred_check_branch
          %441 = sbr.rel (%p439) target = $region52
        $region51: #{tpu_custom_call.1} parent=11 // pred_region
          %s443 = ssub.s32 512, 512
          %444 = vsyncadd [#allocation17], %s443
          %s445 = sshll.u32 [#allocation16], 4
          %s446 = int_to_ptr.vmem [resolvable:$true] %s445
          %451 = dma.hbm_to_vmem [thread:$0]  %s12, 512, %s446, [#allocation17], 128, 128, 8
        $region52: #{tpu_custom_call.1} parent=11 // pred_fallthru
          _
        // Predicated region
        $region53: #{tpu_custom_call.1} parent=11 // pred_check
          %p452 = pneg %p317
        $region54: #{tpu_custom_call.1} parent=11 // pred_check_branch
          %454 = sbr.rel (%p452) target = $region56
        $region55: #{tpu_custom_call.1} parent=11 // pred_region
          _
        $region56: #{tpu_custom_call.1} parent=11 // pred_fallthru
          _
      $region12: #{tpu_custom_call.1} parent=5 // pred_fallthru
        _
      %p455 = scmp.lt.s32.totalorder %s34, 2
      // Predicated region
      $region57: #{tpu_custom_call.1} parent=5 // pred_check
        %p456 = pneg %p455
      $region58: #{tpu_custom_call.1} parent=5 // pred_check_branch
        %458 = sbr.rel (%p456) target = $region60
      $region59: #{tpu_custom_call.1} parent=5 // pred_region
        // Predicated region
        $region61: #{tpu_custom_call.1} parent=59 // pred_check
          %p459 = pneg %p54
        $region62: #{tpu_custom_call.1} parent=59 // pred_check_branch
          %461 = sbr.rel (%p459) target = $region64
        $region63: #{tpu_custom_call.1} parent=59 // pred_region
          %p462 = scmp.lt.s32.totalorder %s34, 1
          %s463 = scalar_select %p462, %s34, 1
          %s464 = smul.addr %s463, 2
          %s465 = smul.addr %s464, 8
          %s466 = scalar_lea.vmem %s1, %s465
        $region64: #{tpu_custom_call.1} parent=59 // pred_fallthru
          _
        // Predicated region
        $region65: #{tpu_custom_call.1} parent=59 // pred_check
          %p467 = pneg %p80
        $region66: #{tpu_custom_call.1} parent=59 // pred_check_branch
          %469 = sbr.rel (%p467) target = $region68
        $region67: #{tpu_custom_call.1} parent=59 // pred_region
          %s470 = sand.u32 %s70, 1
          %s471 = scalar_lea.sflag [#allocation5], %s470
          %s472 = sand.u32 %s70, 1
          %s473 = smul.addr %s472, 16
          %s474 = scalar_lea.vmem [#allocation4], %s473
          %s476 = ssub.s32 256, 256
          %477 = vsyncadd %s471, %s476
          %s478 = smul.addr %s34, 2
          %s479 = smul.addr %s478, 128
          %s480 = scalar_lea.hbm %s2, %s479
          %s481 = sshll.u32 %s474, 4
          %s482 = int_to_ptr.vmem [resolvable:$true] %s481
          %487 = dma.hbm_to_vmem [thread:$0]  %s480, 256, %s482, %s471, 128, 128, 8
        $region68: #{tpu_custom_call.1} parent=59 // pred_fallthru
          _
      $region60: #{tpu_custom_call.1} parent=5 // pred_fallthru
        _
      %p488 = scmp.le.s32.totalorder 1, %s34
      %p489 = scmp.lt.s32.totalorder %s34, 3
      %p490 = pnand %p488, %p489
      %p491 = pneg %p490
      // Predicated region
      $region69: #{tpu_custom_call.1} parent=5 // pred_check
        _
      $region70: #{tpu_custom_call.1} parent=5 // pred_check_branch
        %493 = sbr.rel (%p490) target = $region72
      $region71: #{tpu_custom_call.1} parent=5 // pred_region
        %s494 = ssub.s32 %s34, 1
        %s495 = sand.u32 %s73, 1
        %s496 = scalar_lea.sflag [#allocation5], %s495
        %s497 = sand.u32 %s73, 1
        %s498 = smul.addr %s497, 16
        %s499 = scalar_lea.vmem [#allocation4], %s498
        // Predicated region
        $region73: #{tpu_custom_call.1} parent=71 // pred_check
          %p500 = pneg %p86
        $region74: #{tpu_custom_call.1} parent=71 // pred_check_branch
          %502 = sbr.rel (%p500) target = $region76
        $region75: #{tpu_custom_call.1} parent=71 // pred_region
          %503 = dma.done %s496, 256
        $region76: #{tpu_custom_call.1} parent=71 // pred_fallthru
          _
        // Predicated region
        $region77: #{tpu_custom_call.1} parent=71 // pred_check
          %p504 = pneg %p128
        $region78: #{tpu_custom_call.1} parent=71 // pred_check_branch
          %506 = sbr.rel (%p504) target = $region80
        $region79: #{tpu_custom_call.1} parent=71 // pred_region
          %507 = dma.done [#allocation8], 16
        $region80: #{tpu_custom_call.1} parent=71 // pred_fallthru
          _
        // Predicated region
        $region81: #{tpu_custom_call.1} parent=71 // pred_check
          %p508 = pneg %p149
        $region82: #{tpu_custom_call.1} parent=71 // pred_check_branch
          %510 = sbr.rel (%p508) target = $region84
        $region83: #{tpu_custom_call.1} parent=71 // pred_region
          %511 = dma.done [#allocation8], 512
        $region84: #{tpu_custom_call.1} parent=71 // pred_fallthru
          _
        // Predicated region
        $region85: #{tpu_custom_call.1} parent=71 // pred_check
          %p512 = pneg %p170
        $region86: #{tpu_custom_call.1} parent=71 // pred_check_branch
          %514 = sbr.rel (%p512) target = $region88
        $region87: #{tpu_custom_call.1} parent=71 // pred_region
          %515 = dma.done [#allocation11], 16
        $region88: #{tpu_custom_call.1} parent=71 // pred_fallthru
          _
        // Predicated region
        $region89: #{tpu_custom_call.1} parent=71 // pred_check
          %p516 = pneg %p191
        $region90: #{tpu_custom_call.1} parent=71 // pred_check_branch
          %518 = sbr.rel (%p516) target = $region92
        $region91: #{tpu_custom_call.1} parent=71 // pred_region
          %519 = dma.done [#allocation11], 256
        $region92: #{tpu_custom_call.1} parent=71 // pred_fallthru
          _
        // Predicated region
        $region93: #{tpu_custom_call.1} parent=71 // pred_check
          %p520 = pneg %p212
        $region94: #{tpu_custom_call.1} parent=71 // pred_check_branch
          %522 = sbr.rel (%p520) target = $region96
        $region95: #{tpu_custom_call.1} parent=71 // pred_region
          %523 = dma.done [#allocation14], 16
        $region96: #{tpu_custom_call.1} parent=71 // pred_fallthru
          _
        // Predicated region
        $region97: #{tpu_custom_call.1} parent=71 // pred_check
          %p524 = pneg %p254
        $region98: #{tpu_custom_call.1} parent=71 // pred_check_branch
          %526 = sbr.rel (%p524) target = $region100
        $region99: #{tpu_custom_call.1} parent=71 // pred_region
          %527 = dma.done [#allocation14], 256
        $region100: #{tpu_custom_call.1} parent=71 // pred_fallthru
          _
        // Predicated region
        $region101: #{tpu_custom_call.1} parent=71 // pred_check
          %p528 = pneg %p296
        $region102: #{tpu_custom_call.1} parent=71 // pred_check_branch
          %530 = sbr.rel (%p528) target = $region104
        $region103: #{tpu_custom_call.1} parent=71 // pred_region
          %531 = dma.done [#allocation17], 512
        $region104: #{tpu_custom_call.1} parent=71 // pred_fallthru
          _
        %p532 = scmp.lt.s32.totalorder %s39, 1
        %s533 = scalar_select %p532, %s39, 1
        %s534 = smul.addr %s533, 2
        %s535 = smul.addr %s534, 8
        %s536 = scalar_lea.vmem %s1, %s535
        %p537 = pneg %p60
        %p538 = pneg %p57
        %s539 = sand.u32 %s73, 1
        %s540 = scalar_lea.sflag [#allocation5], %s539
        %s541 = sand.u32 %s73, 1
        %s542 = smul.addr %s541, 16
        %s543 = scalar_lea.vmem [#allocation4], %s542
        %p544 = pneg %p86
        %p545 = pneg %p83
        %p546 = pneg %p107
        %p547 = pneg %p104
        %p548 = pneg %p128
        %p549 = pneg %p125
        %p550 = pneg %p149
        %p551 = pneg %p146
        %p552 = pneg %p170
        %p553 = pneg %p167
        %p554 = pneg %p191
        %p555 = pneg %p188
        %p556 = pneg %p212
        %p557 = pneg %p209
        %p558 = pneg %p233
        %p559 = pneg %p230
        %p560 = pneg %p254
        %p561 = pneg %p251
        %p562 = pneg %p275
        %p563 = pneg %p272
        %p564 = pneg %p296
        %p565 = pneg %p293
        %p566 = pneg %p317
        %p567 = pneg %p314
        %p568 = pneg %p343
        %p569 = pneg %p340
        %s570 = sand.u32 %s330, 1
        %s571 = scalar_lea.sflag [#allocation6], %s570
        %s572 = sand.u32 %s330, 1
        %s573 = smul.addr %s572, 16
        %s574 = scalar_lea.vmem [#allocation18], %s573
        %p575 = scmp.lt.s32.totalorder %s39, 1
        %s576 = scalar_select %p575, %s39, 1
        %s577 = smul.addr %s576, 2
        %s578 = smul.addr %s577, 8
        %s579 = scalar_lea.vmem %s1, %s578
        %s580 = smul.u32 %s39, 128
        %s581 = sld [smem:[#allocation3 + %s580]]
        %v582 = vld [vmem:[%s579] sm:$0xff]
        %v583 = vld [vmem:[%s579 + $0x8] sm:$0xff]
        %v584 = vld [vmem:[%s499] sm:$0xff]
        %v585 = vld [vmem:[%s499 + $0x8] sm:$0xff]
        %v586 = vld [vmem:[%s3] sm:$0xff]
        %v587 = vld [vmem:[%s3 + $0x8] sm:$0xff]
        %v588 = vld [vmem:[%s3 + $0x10] sm:$0xff]
        %v589 = vld [vmem:[%s3 + $0x18] sm:$0xff]
        %v590 = vld [vmem:[#allocation7] sm:$0x1]
        %v592 = vlaneseq
        %v593 = vshrl.u32 %v592, 7
        %v594 = vsub.s32 0, %v593
        %v595 = vrot.slane %v590, %v594
        %vm597 = vcmask 261120
        %v599 = vsel %vm597, %v584, 0
        %v602 = vsel %vm597, %v585, 0
        %604 = vmatprep.subr.mxu0 0.0
        %605 = vmatpush1.msra.mxu0 0.0
        %606 = vmatprep.subr.mxu0 0.0
        %607 = vmatpush1.msra.mxu0 0.0
        %608 = vmatprep.subr.mxu0 0.0
        %609 = vmatpush1.msra.mxu0 0.0
        %610 = vmatprep.subr.mxu0 0.0
        %611 = vmatpush1.msra.mxu0 0.0
        %612 = vmatprep.subr.mxu0 0.0
        %613 = vmatpush1.msra.mxu0 0.0
        %614 = vmatprep.subr.mxu0 0.0
        %615 = vmatpush1.msra.mxu0 0.0
        %616 = vmatprep.subr.mxu0 0.0
        %617 = vmatpush1.msra.mxu0 0.0
        %618 = vmatprep.subr.mxu0 0.0
        %619 = vmatpush1.msra.mxu0 0.0
        %620 = vmatprep.subr.mxu0 0.0
        %621 = vmatpush1.msra.mxu0 0.0
        %622 = vmatprep.subr.mxu0 0.0
        %623 = vmatpush1.msra.mxu0 0.0
        %624 = vmatprep.subr.mxu0 0.0
        %625 = vmatpush1.msra.mxu0 0.0
        %626 = vmatprep.subr.mxu0 0.0
        %627 = vmatpush1.msra.mxu0 0.0
        %628 = vmatprep.subr.mxu0 0.0
        %629 = vmatpush1.msra.mxu0 %v589
        %630 = vmatprep.subr.mxu0 0.0
        %631 = vmatpush1.msra.mxu0 %v588
        %632 = vmatprep.subr.mxu0 0.0
        %633 = vmatpush1.msra.mxu0 %v587
        %634 = vmatprep.subr.mxu0 0.0
        %635 = vmatpush1.msra.mxu0 %v586
        %636 = vmatprep.subr.mxu0 0.0
        %637 = vmatpush2.msra.mxu0 0.0
        %638 = vmatprep.subr.mxu0 0.0
        %639 = vmatpush2.msra.mxu0 0.0
        %640 = vmatprep.subr.mxu0 0.0
        %641 = vmatpush2.msra.mxu0 0.0
        %642 = vmatprep.subr.mxu0 0.0
        %643 = vmatpush2.msra.mxu0 0.0
        %644 = vmatprep.subr.mxu0 0.0
        %645 = vmatpush2.msra.mxu0 0.0
        %646 = vmatprep.subr.mxu0 0.0
        %647 = vmatpush2.msra.mxu0 0.0
        %648 = vmatprep.subr.mxu0 0.0
        %649 = vmatpush2.msra.mxu0 0.0
        %650 = vmatprep.subr.mxu0 0.0
        %651 = vmatpush2.msra.mxu0 0.0
        %652 = vmatprep.subr.mxu0 0.0
        %653 = vmatpush2.msra.mxu0 0.0
        %654 = vmatprep.subr.mxu0 0.0
        %655 = vmatpush2.msra.mxu0 0.0
        %656 = vmatprep.subr.mxu0 0.0
        %657 = vmatpush2.msra.mxu0 0.0
        %658 = vmatprep.subr.mxu0 0.0
        %659 = vmatpush2.msra.mxu0 0.0
        %660 = vmatprep.subr.mxu0 0.0
        %661 = vmatpush2.msra.mxu0 0.0
        %662 = vmatprep.subr.mxu0 0.0
        %663 = vmatpush2.msra.mxu0 0.0
        %664 = vmatprep.subr.mxu0 0.0
        %665 = vmatpush2.msra.mxu0 0.0
        %666 = vmatprep.subr.mxu0 0.0
        %667 = vmatpush2.msra.mxu0 0.0
        %668 = vmatprep.mubr.f32.mxu0 0.0
        %669 = vmatmul.mubr.f32.gmra.mxu0 %v599
        %v670 = vpop.f32.mrf.mxu0
        %v671 = vadd.f32 %v595, %v670
        %v672 = vpop.f32.mrf.mxu0
        %673 = vmatprep.mubr.f32.mxu0 0.0
        %674 = vmatmul.mubr.f32.gmra.mxu0 %v602
        %v675 = vpop.f32.mrf.mxu0
        %v676 = vadd.f32 %v595, %v675
        %v677 = vpop.f32.mrf.mxu0
        %678 = vdwg.mxu0
        %v679 = vld [vmem:[#allocation9] sm:$0xff]
        %v680 = vld [vmem:[#allocation9 + $0x8] sm:$0xff]
        %v681 = vld [vmem:[#allocation9 + $0x10] sm:$0xff]
        %v682 = vld [vmem:[#allocation9 + $0x18] sm:$0xff]
        %v683 = vld [vmem:[#allocation10] sm:$0x1]
        %v685 = vlaneseq
        %v686 = vshrl.u32 %v685, 7
        %v687 = vsub.s32 0, %v686
        %v688 = vrot.slane %v683, %v687
        %v691 = vsel %vm597, %v582, 0
        %v694 = vsel %vm597, %v583, 0
        %696 = vmatprep.subr.mxu0 0.0
        %697 = vmatpush1.msra.mxu0 0.0
        %698 = vmatprep.subr.mxu0 0.0
        %699 = vmatpush1.msra.mxu0 0.0
        %700 = vmatprep.subr.mxu0 0.0
        %701 = vmatpush1.msra.mxu0 0.0
        %702 = vmatprep.subr.mxu0 0.0
        %703 = vmatpush1.msra.mxu0 0.0
        %704 = vmatprep.subr.mxu0 0.0
        %705 = vmatpush1.msra.mxu0 0.0
        %706 = vmatprep.subr.mxu0 0.0
        %707 = vmatpush1.msra.mxu0 0.0
        %708 = vmatprep.subr.mxu0 0.0
        %709 = vmatpush1.msra.mxu0 0.0
        %710 = vmatprep.subr.mxu0 0.0
        %711 = vmatpush1.msra.mxu0 0.0
        %712 = vmatprep.subr.mxu0 0.0
        %713 = vmatpush1.msra.mxu0 0.0
        %714 = vmatprep.subr.mxu0 0.0
        %715 = vmatpush1.msra.mxu0 0.0
        %716 = vmatprep.subr.mxu0 0.0
        %717 = vmatpush1.msra.mxu0 0.0
        %718 = vmatprep.subr.mxu0 0.0
        %719 = vmatpush1.msra.mxu0 0.0
        %720 = vmatprep.subr.mxu0 0.0
        %721 = vmatpush1.msra.mxu0 %v682
        %722 = vmatprep.subr.mxu0 0.0
        %723 = vmatpush1.msra.mxu0 %v681
        %724 = vmatprep.subr.mxu0 0.0
        %725 = vmatpush1.msra.mxu0 %v680
        %726 = vmatprep.subr.mxu0 0.0
        %727 = vmatpush1.msra.mxu0 %v679
        %728 = vmatprep.subr.mxu0 0.0
        %729 = vmatpush2.msra.mxu0 0.0
        %730 = vmatprep.subr.mxu0 0.0
        %731 = vmatpush2.msra.mxu0 0.0
        %732 = vmatprep.subr.mxu0 0.0
        %733 = vmatpush2.msra.mxu0 0.0
        %734 = vmatprep.subr.mxu0 0.0
        %735 = vmatpush2.msra.mxu0 0.0
        %736 = vmatprep.subr.mxu0 0.0
        %737 = vmatpush2.msra.mxu0 0.0
        %738 = vmatprep.subr.mxu0 0.0
        %739 = vmatpush2.msra.mxu0 0.0
        %740 = vmatprep.subr.mxu0 0.0
        %741 = vmatpush2.msra.mxu0 0.0
        %742 = vmatprep.subr.mxu0 0.0
        %743 = vmatpush2.msra.mxu0 0.0
        %744 = vmatprep.subr.mxu0 0.0
        %745 = vmatpush2.msra.mxu0 0.0
        %746 = vmatprep.subr.mxu0 0.0
        %747 = vmatpush2.msra.mxu0 0.0
        %748 = vmatprep.subr.mxu0 0.0
        %749 = vmatpush2.msra.mxu0 0.0
        %750 = vmatprep.subr.mxu0 0.0
        %751 = vmatpush2.msra.mxu0 0.0
        %752 = vmatprep.subr.mxu0 0.0
        %753 = vmatpush2.msra.mxu0 0.0
        %754 = vmatprep.subr.mxu0 0.0
        %755 = vmatpush2.msra.mxu0 0.0
        %756 = vmatprep.subr.mxu0 0.0
        %757 = vmatpush2.msra.mxu0 0.0
        %758 = vmatprep.subr.mxu0 0.0
        %759 = vmatpush2.msra.mxu0 0.0
        %760 = vmatprep.mubr.f32.mxu0 0.0
        %761 = vmatmul.mubr.f32.gmra.mxu0 %v691
        %v762 = vpop.f32.mrf.mxu0
        %v763 = vadd.f32 %v688, %v762
        %v764 = vpop.f32.mrf.mxu0
        %765 = vmatprep.mubr.f32.mxu0 0.0
        %766 = vmatmul.mubr.f32.gmra.mxu0 %v694
        %v767 = vpop.f32.mrf.mxu0
        %v768 = vadd.f32 %v688, %v767
        %v769 = vpop.f32.mrf.mxu0
        %770 = vdwg.mxu0
        %v771 = vlaneseq
        %v772 = vand.u32 %v771, 127
        %v773 = vstv %s581
        %vm774 = vcmp.lt.s32.totalorder %v772, %v773
        %v775 = vsel %vm774, 0.0, -1e+30
        %v776 = vld [vmem:[#allocation13] sm:$0x1]
        %vm777 = vcmask 64512
        %v779 = vsel %vm777, %v671, 0
        %v782 = vsel %vm777, %v676, 0
        %v785 = vsel %vm777, %v763, 0
        %v788 = vsel %vm777, %v768, 0
        %790 = vmatprep.subr.mxu0 0.0
        %791 = vmatpush1.xpose.msra.mxu0 0.0
        %792 = vmatprep.subr.mxu0 0.0
        %793 = vmatpush1.xpose.msra.mxu0 0.0
        %794 = vmatprep.subr.mxu0 0.0
        %795 = vmatpush1.xpose.msra.mxu0 0.0
        %796 = vmatprep.subr.mxu0 0.0
        %797 = vmatpush1.xpose.msra.mxu0 0.0
        %798 = vmatprep.subr.mxu0 0.0
        %799 = vmatpush1.xpose.msra.mxu0 0.0
        %800 = vmatprep.subr.mxu0 0.0
        %801 = vmatpush1.xpose.msra.mxu0 0.0
        %802 = vmatprep.subr.mxu0 0.0
        %803 = vmatpush1.xpose.msra.mxu0 0.0
        %804 = vmatprep.subr.mxu0 0.0
        %805 = vmatpush1.xpose.msra.mxu0 0.0
        %806 = vmatprep.subr.mxu0 0.0
        %807 = vmatpush1.xpose.msra.mxu0 0.0
        %808 = vmatprep.subr.mxu0 0.0
        %809 = vmatpush1.xpose.msra.mxu0 0.0
        %810 = vmatprep.subr.mxu0 0.0
        %811 = vmatpush1.xpose.msra.mxu0 0.0
        %812 = vmatprep.subr.mxu0 0.0
        %813 = vmatpush1.xpose.msra.mxu0 0.0
        %814 = vmatprep.subr.mxu0 0.0
        %815 = vmatpush1.xpose.msra.mxu0 0.0
        %816 = vmatprep.subr.mxu0 0.0
        %817 = vmatpush1.xpose.msra.mxu0 0.0
        %818 = vmatprep.subr.mxu0 0.0
        %819 = vmatpush1.xpose.msra.mxu0 %v788
        %820 = vmatprep.subr.mxu0 0.0
        %821 = vmatpush1.xpose.msra.mxu0 %v785
        %822 = vmatprep.subr.mxu0 0.0
        %823 = vmatpush2.xpose.msra.mxu0 0.0
        %824 = vmatprep.subr.mxu0 0.0
        %825 = vmatpush2.xpose.msra.mxu0 0.0
        %826 = vmatprep.subr.mxu0 0.0
        %827 = vmatpush2.xpose.msra.mxu0 0.0
        %828 = vmatprep.subr.mxu0 0.0
        %829 = vmatpush2.xpose.msra.mxu0 0.0
        %830 = vmatprep.subr.mxu0 0.0
        %831 = vmatpush2.xpose.msra.mxu0 0.0
        %832 = vmatprep.subr.mxu0 0.0
        %833 = vmatpush2.xpose.msra.mxu0 0.0
        %834 = vmatprep.subr.mxu0 0.0
        %835 = vmatpush2.xpose.msra.mxu0 0.0
        %836 = vmatprep.subr.mxu0 0.0
        %837 = vmatpush2.xpose.msra.mxu0 0.0
        %838 = vmatprep.subr.mxu0 0.0
        %839 = vmatpush2.xpose.msra.mxu0 0.0
        %840 = vmatprep.subr.mxu0 0.0
        %841 = vmatpush2.xpose.msra.mxu0 0.0
        %842 = vmatprep.subr.mxu0 0.0
        %843 = vmatpush2.xpose.msra.mxu0 0.0
        %844 = vmatprep.subr.mxu0 0.0
        %845 = vmatpush2.xpose.msra.mxu0 0.0
        %846 = vmatprep.subr.mxu0 0.0
        %847 = vmatpush2.xpose.msra.mxu0 0.0
        %848 = vmatprep.subr.mxu0 0.0
        %849 = vmatpush2.xpose.msra.mxu0 0.0
        %850 = vmatprep.subr.mxu0 0.0
        %851 = vmatpush2.xpose.msra.mxu0 0.0
        %852 = vmatprep.subr.mxu0 0.0
        %853 = vmatpush2.xpose.msra.mxu0 0.0
        %854 = vmatprep.mubr.f32.mxu0 0.0
        %855 = vmatmul.mubr.f32.gmra.mxu0 %v779
        %v856 = vpop.f32.mrf.mxu0
        %v857 = vadd.f32 %v775, %v856
        %v858 = vpop.f32.mrf.mxu0
        %859 = vmatprep.mubr.f32.mxu0 0.0
        %860 = vmatmul.mubr.f32.gmra.mxu0 %v782
        %v861 = vpop.f32.mrf.mxu0
        %v862 = vadd.f32 %v775, %v861
        %v863 = vpop.f32.mrf.mxu0
        %864 = vdwg.mxu0
        %vm865 = vcmask 130048
        %v866 = vsel %vm865, %v857, -inf
        %867 = vmax.xlane.f32.xlu0 %v866
        %v868 = vpop.xlane.xlu0 %867
        %v869 = vsel %vm865, %v862, -inf
        %870 = vmax.xlane.f32.xlu0 %v869
        %v871 = vpop.xlane.xlu0 %870
        %v872 = vsub.f32 %v857, %v868
        %v873 = vsub.f32 %v862, %v871
        %v874 = vmul.f32 %v872, 1.442695
        %v875 = vpow.pop %v874
        %v876 = vmul.f32 %v873, 1.442695
        %v877 = vpow.pop %v876
        %v878 = vsel %vm865, %v875, 0.0
        %879 = vadd.xlane.f32.xlu0 %v878
        %v880 = vpop.xlane.xlu0 %879
        %v881 = vsel %vm865, %v877, 0.0
        %882 = vadd.xlane.f32.xlu0 %v881
        %v883 = vpop.xlane.xlu0 %882
        %v884 = vrcp.pop %v880
        %v885 = vrcp.pop %v883
        %v886 = vmul.f32 %v875, %v884
        %v887 = vmul.f32 %v877, %v885
        %888 = vrot.lane.b32.xlu0 %v763, 112
        %v889 = vpop.permute.xlu0 %888
        %890 = vrot.lane.b32.xlu0 %v768, 112
        %v891 = vpop.permute.xlu0 %890
        %v895 = vsel %vm865, %v886, 0
        %v898 = vsel %vm865, %v887, 0
        %900 = vmatprep.subr.mxu0 0.0
        %901 = vmatpush1.msra.mxu0 0.0
        %902 = vmatprep.subr.mxu0 0.0
        %903 = vmatpush1.msra.mxu0 0.0
        %904 = vmatprep.subr.mxu0 0.0
        %905 = vmatpush1.msra.mxu0 0.0
        %906 = vmatprep.subr.mxu0 0.0
        %907 = vmatpush1.msra.mxu0 0.0
        %908 = vmatprep.subr.mxu0 0.0
        %909 = vmatpush1.msra.mxu0 0.0
        %910 = vmatprep.subr.mxu0 0.0
        %911 = vmatpush1.msra.mxu0 0.0
        %912 = vmatprep.subr.mxu0 0.0
        %913 = vmatpush1.msra.mxu0 0.0
        %914 = vmatprep.subr.mxu0 0.0
        %915 = vmatpush1.msra.mxu0 0.0
        %916 = vmatprep.subr.mxu0 0.0
        %917 = vmatpush1.msra.mxu0 0.0
        %918 = vmatprep.subr.mxu0 0.0
        %919 = vmatpush1.msra.mxu0 0.0
        %920 = vmatprep.subr.mxu0 0.0
        %921 = vmatpush1.msra.mxu0 0.0
        %922 = vmatprep.subr.mxu0 0.0
        %923 = vmatpush1.msra.mxu0 0.0
        %924 = vmatprep.subr.mxu0 0.0
        %925 = vmatpush1.msra.mxu0 0.0
        %926 = vmatprep.subr.mxu0 0.0
        %927 = vmatpush1.msra.mxu0 0.0
        %928 = vmatprep.subr.mxu0 0.0
        %929 = vmatpush1.msra.mxu0 %v891
        %930 = vmatprep.subr.mxu0 0.0
        %931 = vmatpush1.msra.mxu0 %v889
        %932 = vmatprep.subr.mxu0 0.0
        %933 = vmatpush2.msra.mxu0 0.0
        %934 = vmatprep.subr.mxu0 0.0
        %935 = vmatpush2.msra.mxu0 0.0
        %936 = vmatprep.subr.mxu0 0.0
        %937 = vmatpush2.msra.mxu0 0.0
        %938 = vmatprep.subr.mxu0 0.0
        %939 = vmatpush2.msra.mxu0 0.0
        %940 = vmatprep.subr.mxu0 0.0
        %941 = vmatpush2.msra.mxu0 0.0
        %942 = vmatprep.subr.mxu0 0.0
        %943 = vmatpush2.msra.mxu0 0.0
        %944 = vmatprep.subr.mxu0 0.0
        %945 = vmatpush2.msra.mxu0 0.0
        %946 = vmatprep.subr.mxu0 0.0
        %947 = vmatpush2.msra.mxu0 0.0
        %948 = vmatprep.subr.mxu0 0.0
        %949 = vmatpush2.msra.mxu0 0.0
        %950 = vmatprep.subr.mxu0 0.0
        %951 = vmatpush2.msra.mxu0 0.0
        %952 = vmatprep.subr.mxu0 0.0
        %953 = vmatpush2.msra.mxu0 0.0
        %954 = vmatprep.subr.mxu0 0.0
        %955 = vmatpush2.msra.mxu0 0.0
        %956 = vmatprep.subr.mxu0 0.0
        %957 = vmatpush2.msra.mxu0 0.0
        %958 = vmatprep.subr.mxu0 0.0
        %959 = vmatpush2.msra.mxu0 0.0
        %960 = vmatprep.subr.mxu0 0.0
        %961 = vmatpush2.msra.mxu0 0.0
        %962 = vmatprep.subr.mxu0 0.0
        %963 = vmatpush2.msra.mxu0 0.0
        %964 = vmatprep.mubr.f32.mxu0 0.0
        %965 = vmatmul.mubr.f32.gmra.mxu0 %v895
        %v966 = vpop.f32.mrf.mxu0
        %v967 = vadd.f32 0.0, %v966
        %v968 = vpop.f32.mrf.mxu0
        %969 = vmatprep.mubr.f32.mxu0 0.0
        %970 = vmatmul.mubr.f32.gmra.mxu0 %v898
        %v971 = vpop.f32.mrf.mxu0
        %v972 = vadd.f32 0.0, %v971
        %v973 = vpop.f32.mrf.mxu0
        %974 = vdwg.mxu0
        %v975 = vld [vmem:[#allocation12] sm:$0xff]
        %v977 = vsel %vm777, %v967, 0
        %v980 = vsel %vm777, %v972, 0
        %982 = vmatprep.subr.mxu0 0.0
        %983 = vmatpush1.msra.mxu0 0.0
        %984 = vmatprep.subr.mxu0 0.0
        %985 = vmatpush1.msra.mxu0 0.0
        %986 = vmatprep.subr.mxu0 0.0
        %987 = vmatpush1.msra.mxu0 0.0
        %988 = vmatprep.subr.mxu0 0.0
        %989 = vmatpush1.msra.mxu0 0.0
        %990 = vmatprep.subr.mxu0 0.0
        %991 = vmatpush1.msra.mxu0 0.0
        %992 = vmatprep.subr.mxu0 0.0
        %993 = vmatpush1.msra.mxu0 0.0
        %994 = vmatprep.subr.mxu0 0.0
        %995 = vmatpush1.msra.mxu0 0.0
        %996 = vmatprep.subr.mxu0 0.0
        %997 = vmatpush1.msra.mxu0 0.0
        %998 = vmatprep.subr.mxu0 0.0
        %999 = vmatpush1.msra.mxu0 0.0
        %1000 = vmatprep.subr.mxu0 0.0
        %1001 = vmatpush1.msra.mxu0 0.0
        %1002 = vmatprep.subr.mxu0 0.0
        %1003 = vmatpush1.msra.mxu0 0.0
        %1004 = vmatprep.subr.mxu0 0.0
        %1005 = vmatpush1.msra.mxu0 0.0
        %1006 = vmatprep.subr.mxu0 0.0
        %1007 = vmatpush1.msra.mxu0 0.0
        %1008 = vmatprep.subr.mxu0 0.0
        %1009 = vmatpush1.msra.mxu0 0.0
        %1010 = vmatprep.subr.mxu0 0.0
        %1011 = vmatpush1.msra.mxu0 0.0
        %1012 = vmatprep.subr.mxu0 0.0
        %1013 = vmatpush1.msra.mxu0 %v975
        %1014 = vmatprep.subr.mxu0 0.0
        %1015 = vmatpush2.msra.mxu0 0.0
        %1016 = vmatprep.subr.mxu0 0.0
        %1017 = vmatpush2.msra.mxu0 0.0
        %1018 = vmatprep.subr.mxu0 0.0
        %1019 = vmatpush2.msra.mxu0 0.0
        %1020 = vmatprep.subr.mxu0 0.0
        %1021 = vmatpush2.msra.mxu0 0.0
        %1022 = vmatprep.subr.mxu0 0.0
        %1023 = vmatpush2.msra.mxu0 0.0
        %1024 = vmatprep.subr.mxu0 0.0
        %1025 = vmatpush2.msra.mxu0 0.0
        %1026 = vmatprep.subr.mxu0 0.0
        %1027 = vmatpush2.msra.mxu0 0.0
        %1028 = vmatprep.subr.mxu0 0.0
        %1029 = vmatpush2.msra.mxu0 0.0
        %1030 = vmatprep.subr.mxu0 0.0
        %1031 = vmatpush2.msra.mxu0 0.0
        %1032 = vmatprep.subr.mxu0 0.0
        %1033 = vmatpush2.msra.mxu0 0.0
        %1034 = vmatprep.subr.mxu0 0.0
        %1035 = vmatpush2.msra.mxu0 0.0
        %1036 = vmatprep.subr.mxu0 0.0
        %1037 = vmatpush2.msra.mxu0 0.0
        %1038 = vmatprep.subr.mxu0 0.0
        %1039 = vmatpush2.msra.mxu0 0.0
        %1040 = vmatprep.subr.mxu0 0.0
        %1041 = vmatpush2.msra.mxu0 0.0
        %1042 = vmatprep.subr.mxu0 0.0
        %1043 = vmatpush2.msra.mxu0 0.0
        %1044 = vmatprep.subr.mxu0 0.0
        %1045 = vmatpush2.msra.mxu0 0.0
        %1046 = vmatprep.mubr.f32.mxu0 0.0
        %1047 = vmatmul.mubr.f32.gmra.mxu0 %v977
        %v1048 = vpop.f32.mrf.mxu0
        %v1049 = vadd.f32 0.0, %v1048
        %v1050 = vpop.f32.mrf.mxu0
        %1051 = vmatprep.mubr.f32.mxu0 0.0
        %1052 = vmatmul.mubr.f32.gmra.mxu0 %v980
        %v1053 = vpop.f32.mrf.mxu0
        %v1054 = vadd.f32 0.0, %v1053
        %v1055 = vpop.f32.mrf.mxu0
        %1056 = vdwg.mxu0
        %v1058 = vlaneseq
        %v1059 = vshrl.u32 %v1058, 7
        %v1060 = vsub.s32 0, %v1059
        %v1061 = vrot.slane %v776, %v1060
        %v1063 = vadd.f32 %v1061, %v1049
        %v1064 = vadd.f32 %v1061, %v1054
        %1065 = vrot.lane.b32.xlu0 %v671, 120
        %v1066 = vpop.permute.xlu0 %1065
        %1067 = vrot.lane.b32.xlu0 %v676, 120
        %v1068 = vpop.permute.xlu0 %1067
        %1069 = vrot.lane.b32.xlu0 %v763, 120
        %v1070 = vpop.permute.xlu0 %1069
        %1071 = vrot.lane.b32.xlu0 %v768, 120
        %v1072 = vpop.permute.xlu0 %1071
        %v1073 = vsel %vm777, %v1066, 0
        %v1075 = vsel %vm777, %v1068, 0
        %v1077 = vsel %vm777, %v1070, 0
        %v1079 = vsel %vm777, %v1072, 0
        %1081 = vmatprep.subr.mxu0 0.0
        %1082 = vmatpush1.xpose.msra.mxu0 0.0
        %1083 = vmatprep.subr.mxu0 0.0
        %1084 = vmatpush1.xpose.msra.mxu0 0.0
        %1085 = vmatprep.subr.mxu0 0.0
        %1086 = vmatpush1.xpose.msra.mxu0 0.0
        %1087 = vmatprep.subr.mxu0 0.0
        %1088 = vmatpush1.xpose.msra.mxu0 0.0
        %1089 = vmatprep.subr.mxu0 0.0
        %1090 = vmatpush1.xpose.msra.mxu0 0.0
        %1091 = vmatprep.subr.mxu0 0.0
        %1092 = vmatpush1.xpose.msra.mxu0 0.0
        %1093 = vmatprep.subr.mxu0 0.0
        %1094 = vmatpush1.xpose.msra.mxu0 0.0
        %1095 = vmatprep.subr.mxu0 0.0
        %1096 = vmatpush1.xpose.msra.mxu0 0.0
        %1097 = vmatprep.subr.mxu0 0.0
        %1098 = vmatpush1.xpose.msra.mxu0 0.0
        %1099 = vmatprep.subr.mxu0 0.0
        %1100 = vmatpush1.xpose.msra.mxu0 0.0
        %1101 = vmatprep.subr.mxu0 0.0
        %1102 = vmatpush1.xpose.msra.mxu0 0.0
        %1103 = vmatprep.subr.mxu0 0.0
        %1104 = vmatpush1.xpose.msra.mxu0 0.0
        %1105 = vmatprep.subr.mxu0 0.0
        %1106 = vmatpush1.xpose.msra.mxu0 0.0
        %1107 = vmatprep.subr.mxu0 0.0
        %1108 = vmatpush1.xpose.msra.mxu0 0.0
        %1109 = vmatprep.subr.mxu0 0.0
        %1110 = vmatpush1.xpose.msra.mxu0 %v1079
        %1111 = vmatprep.subr.mxu0 0.0
        %1112 = vmatpush1.xpose.msra.mxu0 %v1077
        %1113 = vmatprep.subr.mxu0 0.0
        %1114 = vmatpush2.xpose.msra.mxu0 0.0
        %1115 = vmatprep.subr.mxu0 0.0
        %1116 = vmatpush2.xpose.msra.mxu0 0.0
        %1117 = vmatprep.subr.mxu0 0.0
        %1118 = vmatpush2.xpose.msra.mxu0 0.0
        %1119 = vmatprep.subr.mxu0 0.0
        %1120 = vmatpush2.xpose.msra.mxu0 0.0
        %1121 = vmatprep.subr.mxu0 0.0
        %1122 = vmatpush2.xpose.msra.mxu0 0.0
        %1123 = vmatprep.subr.mxu0 0.0
        %1124 = vmatpush2.xpose.msra.mxu0 0.0
        %1125 = vmatprep.subr.mxu0 0.0
        %1126 = vmatpush2.xpose.msra.mxu0 0.0
        %1127 = vmatprep.subr.mxu0 0.0
        %1128 = vmatpush2.xpose.msra.mxu0 0.0
        %1129 = vmatprep.subr.mxu0 0.0
        %1130 = vmatpush2.xpose.msra.mxu0 0.0
        %1131 = vmatprep.subr.mxu0 0.0
        %1132 = vmatpush2.xpose.msra.mxu0 0.0
        %1133 = vmatprep.subr.mxu0 0.0
        %1134 = vmatpush2.xpose.msra.mxu0 0.0
        %1135 = vmatprep.subr.mxu0 0.0
        %1136 = vmatpush2.xpose.msra.mxu0 0.0
        %1137 = vmatprep.subr.mxu0 0.0
        %1138 = vmatpush2.xpose.msra.mxu0 0.0
        %1139 = vmatprep.subr.mxu0 0.0
        %1140 = vmatpush2.xpose.msra.mxu0 0.0
        %1141 = vmatprep.subr.mxu0 0.0
        %1142 = vmatpush2.xpose.msra.mxu0 0.0
        %1143 = vmatprep.subr.mxu0 0.0
        %1144 = vmatpush2.xpose.msra.mxu0 0.0
        %1145 = vmatprep.mubr.f32.mxu0 0.0
        %1146 = vmatmul.mubr.f32.gmra.mxu0 %v1073
        %v1147 = vpop.f32.mrf.mxu0
        %v1148 = vadd.f32 %v775, %v1147
        %v1149 = vpop.f32.mrf.mxu0
        %1150 = vmatprep.mubr.f32.mxu0 0.0
        %1151 = vmatmul.mubr.f32.gmra.mxu0 %v1075
        %v1152 = vpop.f32.mrf.mxu0
        %v1153 = vadd.f32 %v775, %v1152
        %v1154 = vpop.f32.mrf.mxu0
        %1155 = vdwg.mxu0
        %v1156 = vsel %vm865, %v1148, -inf
        %1157 = vmax.xlane.f32.xlu0 %v1156
        %v1158 = vpop.xlane.xlu0 %1157
        %v1159 = vsel %vm865, %v1153, -inf
        %1160 = vmax.xlane.f32.xlu0 %v1159
        %v1161 = vpop.xlane.xlu0 %1160
        %v1162 = vsub.f32 %v1148, %v1158
        %v1163 = vsub.f32 %v1153, %v1161
        %v1164 = vmul.f32 %v1162, 1.442695
        %v1165 = vpow.pop %v1164
        %v1166 = vmul.f32 %v1163, 1.442695
        %v1167 = vpow.pop %v1166
        %v1168 = vsel %vm865, %v1165, 0.0
        %1169 = vadd.xlane.f32.xlu0 %v1168
        %v1170 = vpop.xlane.xlu0 %1169
        %v1171 = vsel %vm865, %v1167, 0.0
        %1172 = vadd.xlane.f32.xlu0 %v1171
        %v1173 = vpop.xlane.xlu0 %1172
        %v1174 = vrcp.pop %v1170
        %v1175 = vrcp.pop %v1173
        %v1176 = vmul.f32 %v1165, %v1174
        %v1177 = vmul.f32 %v1167, %v1175
        %1178 = vrot.lane.b32.xlu0 %v763, 104
        %v1179 = vpop.permute.xlu0 %1178
        %1180 = vrot.lane.b32.xlu0 %v768, 104
        %v1181 = vpop.permute.xlu0 %1180
        %v1185 = vsel %vm865, %v1176, 0
        %v1188 = vsel %vm865, %v1177, 0
        %1190 = vmatprep.subr.mxu0 0.0
        %1191 = vmatpush1.msra.mxu0 0.0
        %1192 = vmatprep.subr.mxu0 0.0
        %1193 = vmatpush1.msra.mxu0 0.0
        %1194 = vmatprep.subr.mxu0 0.0
        %1195 = vmatpush1.msra.mxu0 0.0
        %1196 = vmatprep.subr.mxu0 0.0
        %1197 = vmatpush1.msra.mxu0 0.0
        %1198 = vmatprep.subr.mxu0 0.0
        %1199 = vmatpush1.msra.mxu0 0.0
        %1200 = vmatprep.subr.mxu0 0.0
        %1201 = vmatpush1.msra.mxu0 0.0
        %1202 = vmatprep.subr.mxu0 0.0
        %1203 = vmatpush1.msra.mxu0 0.0
        %1204 = vmatprep.subr.mxu0 0.0
        %1205 = vmatpush1.msra.mxu0 0.0
        %1206 = vmatprep.subr.mxu0 0.0
        %1207 = vmatpush1.msra.mxu0 0.0
        %1208 = vmatprep.subr.mxu0 0.0
        %1209 = vmatpush1.msra.mxu0 0.0
        %1210 = vmatprep.subr.mxu0 0.0
        %1211 = vmatpush1.msra.mxu0 0.0
        %1212 = vmatprep.subr.mxu0 0.0
        %1213 = vmatpush1.msra.mxu0 0.0
        %1214 = vmatprep.subr.mxu0 0.0
        %1215 = vmatpush1.msra.mxu0 0.0
        %1216 = vmatprep.subr.mxu0 0.0
        %1217 = vmatpush1.msra.mxu0 0.0
        %1218 = vmatprep.subr.mxu0 0.0
        %1219 = vmatpush1.msra.mxu0 %v1181
        %1220 = vmatprep.subr.mxu0 0.0
        %1221 = vmatpush1.msra.mxu0 %v1179
        %1222 = vmatprep.subr.mxu0 0.0
        %1223 = vmatpush2.msra.mxu0 0.0
        %1224 = vmatprep.subr.mxu0 0.0
        %1225 = vmatpush2.msra.mxu0 0.0
        %1226 = vmatprep.subr.mxu0 0.0
        %1227 = vmatpush2.msra.mxu0 0.0
        %1228 = vmatprep.subr.mxu0 0.0
        %1229 = vmatpush2.msra.mxu0 0.0
        %1230 = vmatprep.subr.mxu0 0.0
        %1231 = vmatpush2.msra.mxu0 0.0
        %1232 = vmatprep.subr.mxu0 0.0
        %1233 = vmatpush2.msra.mxu0 0.0
        %1234 = vmatprep.subr.mxu0 0.0
        %1235 = vmatpush2.msra.mxu0 0.0
        %1236 = vmatprep.subr.mxu0 0.0
        %1237 = vmatpush2.msra.mxu0 0.0
        %1238 = vmatprep.subr.mxu0 0.0
        %1239 = vmatpush2.msra.mxu0 0.0
        %1240 = vmatprep.subr.mxu0 0.0
        %1241 = vmatpush2.msra.mxu0 0.0
        %1242 = vmatprep.subr.mxu0 0.0
        %1243 = vmatpush2.msra.mxu0 0.0
        %1244 = vmatprep.subr.mxu0 0.0
        %1245 = vmatpush2.msra.mxu0 0.0
        %1246 = vmatprep.subr.mxu0 0.0
        %1247 = vmatpush2.msra.mxu0 0.0
        %1248 = vmatprep.subr.mxu0 0.0
        %1249 = vmatpush2.msra.mxu0 0.0
        %1250 = vmatprep.subr.mxu0 0.0
        %1251 = vmatpush2.msra.mxu0 0.0
        %1252 = vmatprep.subr.mxu0 0.0
        %1253 = vmatpush2.msra.mxu0 0.0
        %1254 = vmatprep.mubr.f32.mxu0 0.0
        %1255 = vmatmul.mubr.f32.gmra.mxu0 %v1185
        %v1256 = vpop.f32.mrf.mxu0
        %v1257 = vadd.f32 0.0, %v1256
        %v1258 = vpop.f32.mrf.mxu0
        %1259 = vmatprep.mubr.f32.mxu0 0.0
        %1260 = vmatmul.mubr.f32.gmra.mxu0 %v1188
        %v1261 = vpop.f32.mrf.mxu0
        %v1262 = vadd.f32 0.0, %v1261
        %v1263 = vpop.f32.mrf.mxu0
        %1264 = vdwg.mxu0
        %v1265 = vld [vmem:[#allocation12 + $0x8] sm:$0xff]
        %v1267 = vsel %vm777, %v1257, 0
        %v1270 = vsel %vm777, %v1262, 0
        %1272 = vmatprep.subr.mxu0 0.0
        %1273 = vmatpush1.msra.mxu0 0.0
        %1274 = vmatprep.subr.mxu0 0.0
        %1275 = vmatpush1.msra.mxu0 0.0
        %1276 = vmatprep.subr.mxu0 0.0
        %1277 = vmatpush1.msra.mxu0 0.0
        %1278 = vmatprep.subr.mxu0 0.0
        %1279 = vmatpush1.msra.mxu0 0.0
        %1280 = vmatprep.subr.mxu0 0.0
        %1281 = vmatpush1.msra.mxu0 0.0
        %1282 = vmatprep.subr.mxu0 0.0
        %1283 = vmatpush1.msra.mxu0 0.0
        %1284 = vmatprep.subr.mxu0 0.0
        %1285 = vmatpush1.msra.mxu0 0.0
        %1286 = vmatprep.subr.mxu0 0.0
        %1287 = vmatpush1.msra.mxu0 0.0
        %1288 = vmatprep.subr.mxu0 0.0
        %1289 = vmatpush1.msra.mxu0 0.0
        %1290 = vmatprep.subr.mxu0 0.0
        %1291 = vmatpush1.msra.mxu0 0.0
        %1292 = vmatprep.subr.mxu0 0.0
        %1293 = vmatpush1.msra.mxu0 0.0
        %1294 = vmatprep.subr.mxu0 0.0
        %1295 = vmatpush1.msra.mxu0 0.0
        %1296 = vmatprep.subr.mxu0 0.0
        %1297 = vmatpush1.msra.mxu0 0.0
        %1298 = vmatprep.subr.mxu0 0.0
        %1299 = vmatpush1.msra.mxu0 0.0
        %1300 = vmatprep.subr.mxu0 0.0
        %1301 = vmatpush1.msra.mxu0 0.0
        %1302 = vmatprep.subr.mxu0 0.0
        %1303 = vmatpush1.msra.mxu0 %v1265
        %1304 = vmatprep.subr.mxu0 0.0
        %1305 = vmatpush2.msra.mxu0 0.0
        %1306 = vmatprep.subr.mxu0 0.0
        %1307 = vmatpush2.msra.mxu0 0.0
        %1308 = vmatprep.subr.mxu0 0.0
        %1309 = vmatpush2.msra.mxu0 0.0
        %1310 = vmatprep.subr.mxu0 0.0
        %1311 = vmatpush2.msra.mxu0 0.0
        %1312 = vmatprep.subr.mxu0 0.0
        %1313 = vmatpush2.msra.mxu0 0.0
        %1314 = vmatprep.subr.mxu0 0.0
        %1315 = vmatpush2.msra.mxu0 0.0
        %1316 = vmatprep.subr.mxu0 0.0
        %1317 = vmatpush2.msra.mxu0 0.0
        %1318 = vmatprep.subr.mxu0 0.0
        %1319 = vmatpush2.msra.mxu0 0.0
        %1320 = vmatprep.subr.mxu0 0.0
        %1321 = vmatpush2.msra.mxu0 0.0
        %1322 = vmatprep.subr.mxu0 0.0
        %1323 = vmatpush2.msra.mxu0 0.0
        %1324 = vmatprep.subr.mxu0 0.0
        %1325 = vmatpush2.msra.mxu0 0.0
        %1326 = vmatprep.subr.mxu0 0.0
        %1327 = vmatpush2.msra.mxu0 0.0
        %1328 = vmatprep.subr.mxu0 0.0
        %1329 = vmatpush2.msra.mxu0 0.0
        %1330 = vmatprep.subr.mxu0 0.0
        %1331 = vmatpush2.msra.mxu0 0.0
        %1332 = vmatprep.subr.mxu0 0.0
        %1333 = vmatpush2.msra.mxu0 0.0
        %1334 = vmatprep.subr.mxu0 0.0
        %1335 = vmatpush2.msra.mxu0 0.0
        %1336 = vmatprep.mubr.f32.mxu0 0.0
        %1337 = vmatmul.mubr.f32.gmra.mxu0 %v1267
        %v1338 = vpop.f32.mrf.mxu0
        %v1339 = vadd.f32 0.0, %v1338
        %v1340 = vpop.f32.mrf.mxu0
        %1341 = vmatprep.mubr.f32.mxu0 0.0
        %1342 = vmatmul.mubr.f32.gmra.mxu0 %v1270
        %v1343 = vpop.f32.mrf.mxu0
        %v1344 = vadd.f32 0.0, %v1343
        %v1345 = vpop.f32.mrf.mxu0
        %1346 = vdwg.mxu0
        %v1347 = vadd.f32 %v1063, %v1339
        %v1348 = vadd.f32 %v1064, %v1344
        %v1349 = vld [vmem:[%s9] sm:$0xff]
        %v1350 = vld [vmem:[%s9 + $0x8] sm:$0xff]
        %v1351 = vld [vmem:[%s9 + $0x10] sm:$0xff]
        %v1352 = vld [vmem:[%s9 + $0x18] sm:$0xff]
        %v1353 = vld [vmem:[#allocation15] sm:$0xff]
        %v1354 = vld [vmem:[#allocation15 + $0x8] sm:$0xff]
        %v1356 = vsel %vm865, %v1347, 0
        %v1359 = vsel %vm865, %v1348, 0
        %1361 = vmatprep.subr.mxu0 0.0
        %1362 = vmatpush1.msra.mxu0 0.0
        %1363 = vmatprep.subr.mxu0 0.0
        %1364 = vmatpush1.msra.mxu0 0.0
        %1365 = vmatprep.subr.mxu0 0.0
        %1366 = vmatpush1.msra.mxu0 0.0
        %1367 = vmatprep.subr.mxu0 0.0
        %1368 = vmatpush1.msra.mxu0 0.0
        %1369 = vmatprep.subr.mxu0 0.0
        %1370 = vmatpush1.msra.mxu0 0.0
        %1371 = vmatprep.subr.mxu0 0.0
        %1372 = vmatpush1.msra.mxu0 0.0
        %1373 = vmatprep.subr.mxu0 0.0
        %1374 = vmatpush1.msra.mxu0 0.0
        %1375 = vmatprep.subr.mxu0 0.0
        %1376 = vmatpush1.msra.mxu0 0.0
        %1377 = vmatprep.subr.mxu0 0.0
        %1378 = vmatpush1.msra.mxu0 0.0
        %1379 = vmatprep.subr.mxu0 0.0
        %1380 = vmatpush1.msra.mxu0 0.0
        %1381 = vmatprep.subr.mxu0 0.0
        %1382 = vmatpush1.msra.mxu0 0.0
        %1383 = vmatprep.subr.mxu0 0.0
        %1384 = vmatpush1.msra.mxu0 0.0
        %1385 = vmatprep.subr.mxu0 0.0
        %1386 = vmatpush1.msra.mxu0 0.0
        %1387 = vmatprep.subr.mxu0 0.0
        %1388 = vmatpush1.msra.mxu0 0.0
        %1389 = vmatprep.subr.mxu0 0.0
        %1390 = vmatpush1.msra.mxu0 %v1354
        %1391 = vmatprep.subr.mxu0 0.0
        %1392 = vmatpush1.msra.mxu0 %v1353
        %1393 = vmatprep.subr.mxu0 0.0
        %1394 = vmatpush2.msra.mxu0 0.0
        %1395 = vmatprep.subr.mxu0 0.0
        %1396 = vmatpush2.msra.mxu0 0.0
        %1397 = vmatprep.subr.mxu0 0.0
        %1398 = vmatpush2.msra.mxu0 0.0
        %1399 = vmatprep.subr.mxu0 0.0
        %1400 = vmatpush2.msra.mxu0 0.0
        %1401 = vmatprep.subr.mxu0 0.0
        %1402 = vmatpush2.msra.mxu0 0.0
        %1403 = vmatprep.subr.mxu0 0.0
        %1404 = vmatpush2.msra.mxu0 0.0
        %1405 = vmatprep.subr.mxu0 0.0
        %1406 = vmatpush2.msra.mxu0 0.0
        %1407 = vmatprep.subr.mxu0 0.0
        %1408 = vmatpush2.msra.mxu0 0.0
        %1409 = vmatprep.subr.mxu0 0.0
        %1410 = vmatpush2.msra.mxu0 0.0
        %1411 = vmatprep.subr.mxu0 0.0
        %1412 = vmatpush2.msra.mxu0 0.0
        %1413 = vmatprep.subr.mxu0 0.0
        %1414 = vmatpush2.msra.mxu0 0.0
        %1415 = vmatprep.subr.mxu0 0.0
        %1416 = vmatpush2.msra.mxu0 0.0
        %1417 = vmatprep.subr.mxu0 0.0
        %1418 = vmatpush2.msra.mxu0 0.0
        %1419 = vmatprep.subr.mxu0 0.0
        %1420 = vmatpush2.msra.mxu0 0.0
        %1421 = vmatprep.subr.mxu0 0.0
        %1422 = vmatpush2.msra.mxu0 0.0
        %1423 = vmatprep.subr.mxu0 0.0
        %1424 = vmatpush2.msra.mxu0 0.0
        %1425 = vmatprep.mubr.f32.mxu0 0.0
        %1426 = vmatmul.mubr.f32.gmra.mxu0 %v1356
        %v1427 = vpop.f32.mrf.mxu0
        %v1428 = vadd.f32 0.0, %v1427
        %v1429 = vpop.f32.mrf.mxu0
        %1430 = vmatprep.mubr.f32.mxu0 0.0
        %1431 = vmatmul.mubr.f32.gmra.mxu0 %v1359
        %v1432 = vpop.f32.mrf.mxu0
        %v1433 = vadd.f32 0.0, %v1432
        %v1434 = vpop.f32.mrf.mxu0
        %1435 = vdwg.mxu0
        %1436 = vmatprep.subr.mxu0 0.0
        %1437 = vmatpush1.msra.mxu0 0.0
        %1438 = vmatprep.subr.mxu0 0.0
        %1439 = vmatpush1.msra.mxu0 0.0
        %1440 = vmatprep.subr.mxu0 0.0
        %1441 = vmatpush1.msra.mxu0 0.0
        %1442 = vmatprep.subr.mxu0 0.0
        %1443 = vmatpush1.msra.mxu0 0.0
        %1444 = vmatprep.subr.mxu0 0.0
        %1445 = vmatpush1.msra.mxu0 0.0
        %1446 = vmatprep.subr.mxu0 0.0
        %1447 = vmatpush1.msra.mxu0 0.0
        %1448 = vmatprep.subr.mxu0 0.0
        %1449 = vmatpush1.msra.mxu0 0.0
        %1450 = vmatprep.subr.mxu0 0.0
        %1451 = vmatpush1.msra.mxu0 0.0
        %1452 = vmatprep.subr.mxu0 0.0
        %1453 = vmatpush1.msra.mxu0 0.0
        %1454 = vmatprep.subr.mxu0 0.0
        %1455 = vmatpush1.msra.mxu0 0.0
        %1456 = vmatprep.subr.mxu0 0.0
        %1457 = vmatpush1.msra.mxu0 0.0
        %1458 = vmatprep.subr.mxu0 0.0
        %1459 = vmatpush1.msra.mxu0 0.0
        %1460 = vmatprep.subr.mxu0 0.0
        %1461 = vmatpush1.msra.mxu0 %v1352
        %1462 = vmatprep.subr.mxu0 0.0
        %1463 = vmatpush1.msra.mxu0 %v1351
        %1464 = vmatprep.subr.mxu0 0.0
        %1465 = vmatpush1.msra.mxu0 %v1350
        %1466 = vmatprep.subr.mxu0 0.0
        %1467 = vmatpush1.msra.mxu0 %v1349
        %1468 = vmatprep.subr.mxu0 0.0
        %1469 = vmatpush2.msra.mxu0 0.0
        %1470 = vmatprep.subr.mxu0 0.0
        %1471 = vmatpush2.msra.mxu0 0.0
        %1472 = vmatprep.subr.mxu0 0.0
        %1473 = vmatpush2.msra.mxu0 0.0
        %1474 = vmatprep.subr.mxu0 0.0
        %1475 = vmatpush2.msra.mxu0 0.0
        %1476 = vmatprep.subr.mxu0 0.0
        %1477 = vmatpush2.msra.mxu0 0.0
        %1478 = vmatprep.subr.mxu0 0.0
        %1479 = vmatpush2.msra.mxu0 0.0
        %1480 = vmatprep.subr.mxu0 0.0
        %1481 = vmatpush2.msra.mxu0 0.0
        %1482 = vmatprep.subr.mxu0 0.0
        %1483 = vmatpush2.msra.mxu0 0.0
        %1484 = vmatprep.subr.mxu0 0.0
        %1485 = vmatpush2.msra.mxu0 0.0
        %1486 = vmatprep.subr.mxu0 0.0
        %1487 = vmatpush2.msra.mxu0 0.0
        %1488 = vmatprep.subr.mxu0 0.0
        %1489 = vmatpush2.msra.mxu0 0.0
        %1490 = vmatprep.subr.mxu0 0.0
        %1491 = vmatpush2.msra.mxu0 0.0
        %1492 = vmatprep.subr.mxu0 0.0
        %1493 = vmatpush2.msra.mxu0 0.0
        %1494 = vmatprep.subr.mxu0 0.0
        %1495 = vmatpush2.msra.mxu0 0.0
        %1496 = vmatprep.subr.mxu0 0.0
        %1497 = vmatpush2.msra.mxu0 0.0
        %1498 = vmatprep.subr.mxu0 0.0
        %1499 = vmatpush2.msra.mxu0 0.0
        %1500 = vmatprep.mubr.f32.mxu0 0.0
        %1501 = vmatmul.mubr.f32.gmra.mxu0 %v599
        %v1502 = vpop.f32.mrf.mxu0
        %v1503 = vadd.f32 %v1428, %v1502
        %v1504 = vpop.f32.mrf.mxu0
        %1505 = vmatprep.mubr.f32.mxu0 0.0
        %1506 = vmatmul.mubr.f32.gmra.mxu0 %v602
        %v1507 = vpop.f32.mrf.mxu0
        %v1508 = vadd.f32 %v1433, %v1507
        %v1509 = vpop.f32.mrf.mxu0
        %1510 = vdwg.mxu0
        %v1511 = vld [vmem:[%s11] sm:$0x1]
        %v1513 = vlaneseq
        %v1514 = vshrl.u32 %v1513, 7
        %v1515 = vsub.s32 0, %v1514
        %v1516 = vrot.slane %v1511, %v1515
        %v1518 = vadd.f32 %v1503, %v1516
        %v1519 = vadd.f32 %v1508, %v1516
        %v1520 = vmax.f32 %v1518, 0.0
        %v1521 = vmax.f32 %v1519, 0.0
        %v1522 = vld [vmem:[#allocation16] sm:$0xff]
        %v1523 = vld [vmem:[#allocation16 + $0x8] sm:$0xff]
        %v1524 = vld [vmem:[#allocation16 + $0x10] sm:$0xff]
        %v1525 = vld [vmem:[#allocation16 + $0x18] sm:$0xff]
        %v1526 = vld [vmem:[%s13] sm:$0x1]
        %v1528 = vlaneseq
        %v1529 = vshrl.u32 %v1528, 7
        %v1530 = vsub.s32 0, %v1529
        %v1531 = vrot.slane %v1526, %v1530
        %v1534 = vsel %vm597, %v1520, 0
        %v1537 = vsel %vm597, %v1521, 0
        %1539 = vmatprep.subr.mxu0 0.0
        %1540 = vmatpush1.msra.mxu0 0.0
        %1541 = vmatprep.subr.mxu0 0.0
        %1542 = vmatpush1.msra.mxu0 0.0
        %1543 = vmatprep.subr.mxu0 0.0
        %1544 = vmatpush1.msra.mxu0 0.0
        %1545 = vmatprep.subr.mxu0 0.0
        %1546 = vmatpush1.msra.mxu0 0.0
        %1547 = vmatprep.subr.mxu0 0.0
        %1548 = vmatpush1.msra.mxu0 0.0
        %1549 = vmatprep.subr.mxu0 0.0
        %1550 = vmatpush1.msra.mxu0 0.0
        %1551 = vmatprep.subr.mxu0 0.0
        %1552 = vmatpush1.msra.mxu0 0.0
        %1553 = vmatprep.subr.mxu0 0.0
        %1554 = vmatpush1.msra.mxu0 0.0
        %1555 = vmatprep.subr.mxu0 0.0
        %1556 = vmatpush1.msra.mxu0 0.0
        %1557 = vmatprep.subr.mxu0 0.0
        %1558 = vmatpush1.msra.mxu0 0.0
        %1559 = vmatprep.subr.mxu0 0.0
        %1560 = vmatpush1.msra.mxu0 0.0
        %1561 = vmatprep.subr.mxu0 0.0
        %1562 = vmatpush1.msra.mxu0 0.0
        %1563 = vmatprep.subr.mxu0 0.0
        %1564 = vmatpush1.msra.mxu0 %v1525
        %1565 = vmatprep.subr.mxu0 0.0
        %1566 = vmatpush1.msra.mxu0 %v1524
        %1567 = vmatprep.subr.mxu0 0.0
        %1568 = vmatpush1.msra.mxu0 %v1523
        %1569 = vmatprep.subr.mxu0 0.0
        %1570 = vmatpush1.msra.mxu0 %v1522
        %1571 = vmatprep.subr.mxu0 0.0
        %1572 = vmatpush2.msra.mxu0 0.0
        %1573 = vmatprep.subr.mxu0 0.0
        %1574 = vmatpush2.msra.mxu0 0.0
        %1575 = vmatprep.subr.mxu0 0.0
        %1576 = vmatpush2.msra.mxu0 0.0
        %1577 = vmatprep.subr.mxu0 0.0
        %1578 = vmatpush2.msra.mxu0 0.0
        %1579 = vmatprep.subr.mxu0 0.0
        %1580 = vmatpush2.msra.mxu0 0.0
        %1581 = vmatprep.subr.mxu0 0.0
        %1582 = vmatpush2.msra.mxu0 0.0
        %1583 = vmatprep.subr.mxu0 0.0
        %1584 = vmatpush2.msra.mxu0 0.0
        %1585 = vmatprep.subr.mxu0 0.0
        %1586 = vmatpush2.msra.mxu0 0.0
        %1587 = vmatprep.subr.mxu0 0.0
        %1588 = vmatpush2.msra.mxu0 0.0
        %1589 = vmatprep.subr.mxu0 0.0
        %1590 = vmatpush2.msra.mxu0 0.0
        %1591 = vmatprep.subr.mxu0 0.0
        %1592 = vmatpush2.msra.mxu0 0.0
        %1593 = vmatprep.subr.mxu0 0.0
        %1594 = vmatpush2.msra.mxu0 0.0
        %1595 = vmatprep.subr.mxu0 0.0
        %1596 = vmatpush2.msra.mxu0 0.0
        %1597 = vmatprep.subr.mxu0 0.0
        %1598 = vmatpush2.msra.mxu0 0.0
        %1599 = vmatprep.subr.mxu0 0.0
        %1600 = vmatpush2.msra.mxu0 0.0
        %1601 = vmatprep.subr.mxu0 0.0
        %1602 = vmatpush2.msra.mxu0 0.0
        %1603 = vmatprep.mubr.f32.mxu0 0.0
        %1604 = vmatmul.mubr.f32.gmra.mxu0 %v1534
        %v1605 = vpop.f32.mrf.mxu0
        %v1606 = vadd.f32 %v1531, %v1605
        %v1607 = vpop.f32.mrf.mxu0
        %1608 = vmatprep.mubr.f32.mxu0 0.0
        %1609 = vmatmul.mubr.f32.gmra.mxu0 %v1537
        %v1610 = vpop.f32.mrf.mxu0
        %v1611 = vadd.f32 %v1531, %v1610
        %v1612 = vpop.f32.mrf.mxu0
        %1613 = vdwg.mxu0
        %v1614 = vadd.f32 %v584, %v1606
        %v1615 = vadd.f32 %v585, %v1611
        %1616 = vst.msk [vmem:[%s574] sm:$0xff] %vm597, %v1614
        %1617 = vst.msk [vmem:[%s574 + $0x8] sm:$0xff] %vm597, %v1615
        %s1618 = sand.u32 %s330, 1
        %s1619 = scalar_lea.sflag [#allocation6], %s1618
        %s1620 = sand.u32 %s330, 1
        %s1621 = smul.addr %s1620, 16
        %s1622 = scalar_lea.vmem [#allocation18], %s1621
        // Predicated region
        $region105: #{tpu_custom_call.1} parent=71 // pred_check
          %p1623 = pneg %p340
        $region106: #{tpu_custom_call.1} parent=71 // pred_check_branch
          %1625 = sbr.rel (%p1623) target = $region108
        $region107: #{tpu_custom_call.1} parent=71 // pred_region
          %s1627 = ssub.s32 256, 256
          %1628 = vsyncadd %s1619, %s1627
          %s1629 = smul.addr %s39, 2
          %s1630 = smul.addr %s1629, 128
          %s1631 = scalar_lea.hbm %s14, %s1630
          %s1632 = sshll.u32 %s1622, 4
          %s1633 = int_to_ptr.vmem [resolvable:$true] %s1632
          %1638 = dma.vmem_to_hbm [thread:$0]  %s1633, 256, %s1631, %s1619, 128, 128, 8
        $region108: #{tpu_custom_call.1} parent=71 // pred_fallthru
          _
      $region72: #{tpu_custom_call.1} parent=5 // pred_fallthru
        _
      %p1639 = scmp.le.s32.totalorder 2, %s34
      // Predicated region
      $region109: #{tpu_custom_call.1} parent=5 // pred_check
        %p1640 = pneg %p1639
      $region110: #{tpu_custom_call.1} parent=5 // pred_check_branch
        %1642 = sbr.rel (%p1640) target = $region112
      $region111: #{tpu_custom_call.1} parent=5 // pred_region
        %s1643 = ssub.s32 %s34, 2
        // Predicated region
        $region113: #{tpu_custom_call.1} parent=111 // pred_check
          %p1644 = pneg %p346
        $region114: #{tpu_custom_call.1} parent=111 // pred_check_branch
          %1646 = sbr.rel (%p1644) target = $region116
        $region115: #{tpu_custom_call.1} parent=111 // pred_region
          %s1647 = sand.u32 %s331, 1
          %s1648 = scalar_lea.sflag [#allocation6], %s1647
          %s1649 = sand.u32 %s331, 1
          %s1650 = smul.addr %s1649, 16
          %s1651 = scalar_lea.vmem [#allocation18], %s1650
          %1652 = dma.done %s1648, 256
        $region116: #{tpu_custom_call.1} parent=111 // pred_fallthru
          _
      $region112: #{tpu_custom_call.1} parent=5 // pred_fallthru
        _
    $region6: #{tpu_custom_call.1} parent=1 // loop_footer
      %s38 = sadd.s32 1, %s34
    $region7: #{tpu_custom_call.1} parent=1 // loop_footer_branch
      %33 = sbr.rel target = $region3
    $region8: #{tpu_custom_call.1} parent=1 // loop_exit
      _
    %1653 = vsyncpa [#allocation5], 1
    %s1654 = scalar_lea.sflag [#allocation5], 1
    %1655 = vsyncpa %s1654, 1
    %1656 = vsyncpa [#allocation8], 1
    %1657 = vsyncpa [#allocation11], 1
    %1658 = vsyncpa [#allocation14], 1
    %1659 = vsyncpa [#allocation17], 1
    %1660 = vsyncpa [#allocation6], 1
    %s1661 = scalar_lea.sflag [#allocation6], 1
    %1662 = vsyncpa %s1661, 1

</llo_original>
